<compile_context>
chip_gen: v7x
topology: tpu7x:2x2x1
jax: 0.10.0
libtpu: 0.0.40
codegen_flags: <defaults>
</compile_context>

<pallas_src>
import math
import functools

import jax
import jax.numpy as jnp
from jax.experimental import pallas as pl
from jax.experimental.pallas import tpu as pltpu

# ----------------------------- config -----------------------------
HIDDEN = 32
NUM_HEADS = 4
HEAD_DIM = HIDDEN // NUM_HEADS
SEQ = 8
BATCH = 2
LN_EPS = 1e-12
MASK_NEG = -1e30   # finite stand-in for masked_fill(-inf): NaN-safe, numerically identical


# --------------------- fused kernel: QKV + attention + self-output ---------------------
def _fused_attention_kernel(x_ref, wq_ref, wk_ref, wv_ref, qb_ref, vb_ref,
                            bias_ref, wo_ref, bo_ref, g_ref, beta_ref, o_ref,
                            *, num_heads, head_dim, eps):
    x = x_ref[0].astype(jnp.float32)                                   # (S, H)

    # --- QKV projections (1/sqrt(D) pre-folded into wq / qb by the wrapper) ---
    q = jnp.dot(x, wq_ref[...], preferred_element_type=jnp.float32) + qb_ref[...]
    k = jnp.dot(x, wk_ref[...], preferred_element_type=jnp.float32)
    v = jnp.dot(x, wv_ref[...], preferred_element_type=jnp.float32) + vb_ref[...]

    # --- all heads in this grid step; context built directly in merged (S, H) layout ---
    ctx_parts = []
    for h in range(num_heads):                                          # static unroll (nH=4)
        lo = h * head_dim
        hi = lo + head_dim
        qh = q[:, lo:hi]                                                # (S, D)
        kh = k[:, lo:hi]
        vh = v[:, lo:hi]
        scores = jax.lax.dot_general(
            qh, kh, (((1,), (1,)), ((), ())),
            preferred_element_type=jnp.float32)                         # (S, S)
        # combined bias = rel_pos + rel_2d_pos + additive mask (precomputed)
        scores = scores + bias_ref[0, h]
        # explicit softmax in fp32; reciprocal on the EUP slot
        m = jnp.max(scores, axis=-1, keepdims=True)
        e = jnp.exp(scores - m)
        denom = jnp.sum(e, axis=-1, keepdims=True)
        probs = e * pl.reciprocal(denom, approx=True)
        # dropout is identity in eval mode
        ctx_parts.append(jnp.dot(probs, vh, preferred_element_type=jnp.float32))
    ctx = jnp.concatenate(ctx_parts, axis=-1)                           # (S, H)

    # --- self-output: dense + residual + LayerNorm (dropout = identity) ---
    y = jnp.dot(ctx, wo_ref[...], preferred_element_type=jnp.float32) + bo_ref[...]
    y = y + x                                                           # residual
    mean = jnp.mean(y, axis=-1, keepdims=True)
    var = jnp.mean((y - mean) ** 2, axis=-1, keepdims=True)
    yn = (y - mean) * jax.lax.rsqrt(var + eps)
    o_ref[0] = (yn * g_ref[...] + beta_ref[...]).astype(o_ref.dtype)


# --------------------- full module forward (JAX glue + one pallas_call) ---------------------
def layoutlmv2_attention(params, hidden_states, attention_mask, rel_pos, rel_2d_pos):
    B, S, H = hidden_states.shape
    nH, D = NUM_HEADS, HEAD_DIM
    scale = 1.0 / math.sqrt(D)

    # Trace-time weight prep (one-off tiny XLA ops):
    w_qkv = params["w_qkv"]
    w_q = w_qkv[:, :H] * scale          # fold 1/sqrt(D) into Q weight
    w_k = w_qkv[:, H:2 * H]
    w_v = w_qkv[:, 2 * H:]
    q_bias = params["q_bias"] * scale   # fold scale into Q bias as well
    v_bias = params["v_bias"]

    # Pre-combine relative bias + spatial bias + additive attention mask.
    # attention_mask: (B, 1, 1, S), nonzero == masked (torch masked_fill semantics).
    mask_bias = jnp.where(attention_mask != 0, jnp.float32(MASK_NEG), jnp.float32(0.0))
    bias = (rel_pos + rel_2d_pos + mask_bias).astype(jnp.float32)       # (B, nH, S, S)

    kern = functools.partial(_fused_attention_kernel,
                             num_heads=nH, head_dim=D, eps=LN_EPS)

    return pl.pallas_call(
        kern,
        out_shape=jax.ShapeDtypeStruct((B, S, H), hidden_states.dtype),
        grid=(B,),
        in_specs=[
            pl.BlockSpec((1, S, H), lambda b: (b, 0, 0)),        # hidden_states
            pl.BlockSpec((H, H), lambda b: (0, 0)),              # w_q (scaled)
            pl.BlockSpec((H, H), lambda b: (0, 0)),              # w_k
            pl.BlockSpec((H, H), lambda b: (0, 0)),              # w_v
            pl.BlockSpec((1, H), lambda b: (0, 0)),              # q_bias (scaled)
            pl.BlockSpec((1, H), lambda b: (0, 0)),              # v_bias
            pl.BlockSpec((1, nH, S, S), lambda b: (b, 0, 0, 0)),  # combined bias
            pl.BlockSpec((H, H), lambda b: (0, 0)),              # w_out
            pl.BlockSpec((1, H), lambda b: (0, 0)),              # b_out
            pl.BlockSpec((1, H), lambda b: (0, 0)),              # ln_gamma
            pl.BlockSpec((1, H), lambda b: (0, 0)),              # ln_beta
        ],
        out_specs=pl.BlockSpec((1, S, H), lambda b: (b, 0, 0)),
        compiler_params=pltpu.CompilerParams(
            dimension_semantics=("parallel",)),                   # megacore: batch across TCs
    )(hidden_states, w_q, w_k, w_v, q_bias, v_bias, bias,
      params["w_out"], params["b_out"], params["ln_gamma"], params["ln_beta"])


# --------------------- deterministic param init ---------------------
def init_params(key):
    k1, k2, k3 = jax.random.split(key, 3)
    return {
        # fast_qkv linear has no bias; stored as (in, out)
        "w_qkv": (jax.random.normal(k1, (HIDDEN, 3 * HIDDEN), jnp.float32) * 0.02),
        "q_bias": jnp.zeros((1, HIDDEN), jnp.float32),   # nn.Parameter(torch.zeros)
        "v_bias": jnp.zeros((1, HIDDEN), jnp.float32),
        "w_out": (jax.random.normal(k2, (HIDDEN, HIDDEN), jnp.float32) * 0.02),
        "b_out": (jax.random.normal(k3, (1, HIDDEN), jnp.float32) * 0.02),
        "ln_gamma": jnp.ones((1, HIDDEN), jnp.float32),
        "ln_beta": jnp.zeros((1, HIDDEN), jnp.float32),
    }


if __name__ == "__main__":
    key = jax.random.PRNGKey(0)
    kp, kh, kr1, kr2 = jax.random.split(key, 4)

    params = init_params(kp)
    hidden_states = jax.random.normal(kh, (BATCH, SEQ, HIDDEN), jnp.float32)
    rel_pos = jax.random.normal(kr1, (BATCH, NUM_HEADS, SEQ, SEQ), jnp.float32) * 0.1
    rel_2d_pos = jax.random.normal(kr2, (BATCH, NUM_HEADS, SEQ, SEQ), jnp.float32) * 0.1

    # mask: nonzero means "masked out"; batch 0 attends to everything,
    # batch 1 masks the last two key positions.
    attention_mask = jnp.zeros((BATCH, 1, 1, SEQ), jnp.float32)
    attention_mask = attention_mask.at[1, 0, 0, SEQ - 2:].set(1.0)

    out = layoutlmv2_attention(params, hidden_states, attention_mask, rel_pos, rel_2d_pos)
    jax.block_until_ready(out)
    assert out.shape == (BATCH, SEQ, HIDDEN)
    assert bool(jnp.all(jnp.isfinite(out)))
    print("KERNEL_OK")
</pallas_src>

<mosaic_0001>
module attributes {stable_mosaic.version = 11 : i64} {
  func.func @_fused_attention_kernel(%arg0: i32, %arg1: memref<1x8x32xf32, #tpu.memory_space<vmem>>, %arg2: memref<32x32xf32, #tpu.memory_space<vmem>>, %arg3: memref<32x32xf32, #tpu.memory_space<vmem>>, %arg4: memref<32x32xf32, #tpu.memory_space<vmem>>, %arg5: memref<1x32xf32, #tpu.memory_space<vmem>>, %arg6: memref<1x32xf32, #tpu.memory_space<vmem>>, %arg7: memref<1x4x8x8xf32, #tpu.memory_space<vmem>>, %arg8: memref<32x32xf32, #tpu.memory_space<vmem>>, %arg9: memref<1x32xf32, #tpu.memory_space<vmem>>, %arg10: memref<1x32xf32, #tpu.memory_space<vmem>>, %arg11: memref<1x32xf32, #tpu.memory_space<vmem>>, %arg12: memref<1x8x32xf32, #tpu.memory_space<vmem>>) attributes {dimension_semantics = [#tpu.dimension_semantics<parallel>], iteration_bounds = array<i64: 2>, scalar_prefetch = 0 : i64, scratch_operands = 0 : i64, tpu.core_type = #tpu.core_type<tc>, window_params = [{transform_indices = @transform_0, window_bounds = array<i64: 1, 8, 32>}, {pipeline_mode = #tpu.pipeline_mode<synchronous>, transform_indices = @transform_1, window_bounds = array<i64: 32, 32>}, {pipeline_mode = #tpu.pipeline_mode<synchronous>, transform_indices = @transform_2, window_bounds = array<i64: 32, 32>}, {pipeline_mode = #tpu.pipeline_mode<synchronous>, transform_indices = @transform_3, window_bounds = array<i64: 32, 32>}, {pipeline_mode = #tpu.pipeline_mode<synchronous>, transform_indices = @transform_4, window_bounds = array<i64: 1, 32>}, {pipeline_mode = #tpu.pipeline_mode<synchronous>, transform_indices = @transform_5, window_bounds = array<i64: 1, 32>}, {transform_indices = @transform_6, window_bounds = array<i64: 1, 4, 8, 8>}, {pipeline_mode = #tpu.pipeline_mode<synchronous>, transform_indices = @transform_7, window_bounds = array<i64: 32, 32>}, {pipeline_mode = #tpu.pipeline_mode<synchronous>, transform_indices = @transform_8, window_bounds = array<i64: 1, 32>}, {pipeline_mode = #tpu.pipeline_mode<synchronous>, transform_indices = @transform_9, window_bounds = array<i64: 1, 32>}, {pipeline_mode = #tpu.pipeline_mode<synchronous>, transform_indices = @transform_10, window_bounds = array<i64: 1, 32>}, {transform_indices = @transform_11, window_bounds = array<i64: 1, 8, 32>}]} {
    %c0 = arith.constant 0 : index
    %c0_0 = arith.constant 0 : index
    %c0_1 = arith.constant 0 : index
    %0 = vector.load %arg1[%c0, %c0_0, %c0_1] : memref<1x8x32xf32, #tpu.memory_space<vmem>>, vector<1x8x32xf32>
    %1 = vector.shape_cast %0 : vector<1x8x32xf32> to vector<8x32xf32>
    %c0_2 = arith.constant 0 : index
    %c0_3 = arith.constant 0 : index
    %2 = vector.load %arg2[%c0_2, %c0_3] : memref<32x32xf32, #tpu.memory_space<vmem>>, vector<32x32xf32>
    %cst = arith.constant dense<0.000000e+00> : vector<8x32xf32>
    %3 = tpu.matmul %1, %2, %cst {dimension_numbers = #tpu.dot_dimension_numbers<[1], [0], [0], [1], [0, 0, 1, 1], [], []>} : vector<8x32xf32>, vector<32x32xf32>, vector<8x32xf32> -> vector<8x32xf32>
    %c0_4 = arith.constant 0 : index
    %c0_5 = arith.constant 0 : index
    %4 = vector.load %arg5[%c0_4, %c0_5] : memref<1x32xf32, #tpu.memory_space<vmem>>, vector<1x32xf32>
    %5 = vector.broadcast %4 : vector<1x32xf32> to vector<8x32xf32>
    %6 = arith.addf %3, %5 : vector<8x32xf32>
    %c0_6 = arith.constant 0 : index
    %c0_7 = arith.constant 0 : index
    %7 = vector.load %arg3[%c0_6, %c0_7] : memref<32x32xf32, #tpu.memory_space<vmem>>, vector<32x32xf32>
    %cst_8 = arith.constant dense<0.000000e+00> : vector<8x32xf32>
    %8 = tpu.matmul %1, %7, %cst_8 {dimension_numbers = #tpu.dot_dimension_numbers<[1], [0], [0], [1], [0, 0, 1, 1], [], []>} : vector<8x32xf32>, vector<32x32xf32>, vector<8x32xf32> -> vector<8x32xf32>
    %c0_9 = arith.constant 0 : index
    %c0_10 = arith.constant 0 : index
    %9 = vector.load %arg4[%c0_9, %c0_10] : memref<32x32xf32, #tpu.memory_space<vmem>>, vector<32x32xf32>
    %cst_11 = arith.constant dense<0.000000e+00> : vector<8x32xf32>
    %10 = tpu.matmul %1, %9, %cst_11 {dimension_numbers = #tpu.dot_dimension_numbers<[1], [0], [0], [1], [0, 0, 1, 1], [], []>} : vector<8x32xf32>, vector<32x32xf32>, vector<8x32xf32> -> vector<8x32xf32>
    %c0_12 = arith.constant 0 : index
    %c0_13 = arith.constant 0 : index
    %11 = vector.load %arg6[%c0_12, %c0_13] : memref<1x32xf32, #tpu.memory_space<vmem>>, vector<1x32xf32>
    %12 = vector.broadcast %11 : vector<1x32xf32> to vector<8x32xf32>
    %13 = arith.addf %10, %12 : vector<8x32xf32>
    %14 = vector.extract_strided_slice %6 {offsets = [0, 0], sizes = [8, 8], strides = [1, 1]} : vector<8x32xf32> to vector<8x8xf32>
    %15 = vector.extract_strided_slice %8 {offsets = [0, 0], sizes = [8, 8], strides = [1, 1]} : vector<8x32xf32> to vector<8x8xf32>
    %16 = vector.extract_strided_slice %13 {offsets = [0, 0], sizes = [8, 8], strides = [1, 1]} : vector<8x32xf32> to vector<8x8xf32>
    %cst_14 = arith.constant dense<0.000000e+00> : vector<8x8xf32>
    %17 = tpu.matmul %14, %15, %cst_14 {dimension_numbers = #tpu.dot_dimension_numbers<[1], [1], [0], [0], [0, 0, 1, 0], [], []>} : vector<8x8xf32>, vector<8x8xf32>, vector<8x8xf32> -> vector<8x8xf32>
    %c0_15 = arith.constant 0 : index
    %c0_16 = arith.constant 0 : index
    %c0_17 = arith.constant 0 : index
    %c0_18 = arith.constant 0 : index
    %18 = vector.load %arg7[%c0_15, %c0_16, %c0_17, %c0_18] : memref<1x4x8x8xf32, #tpu.memory_space<vmem>>, vector<1x1x8x8xf32>
    %19 = vector.shape_cast %18 : vector<1x1x8x8xf32> to vector<8x8xf32>
    %20 = arith.addf %17, %19 : vector<8x8xf32>
    %cst_19 = arith.constant dense<0xFF800000> : vector<8xf32>
    %21 = vector.multi_reduction <maximumf>, %20, %cst_19 [1] : vector<8x8xf32> to vector<8xf32>
    %22 = vector.shape_cast %21 : vector<8xf32> to vector<8x1xf32>
    %23 = vector.broadcast %22 : vector<8x1xf32> to vector<8x8xf32>
    %24 = arith.subf %20, %23 : vector<8x8xf32>
    %25 = math.exp %24 : vector<8x8xf32>
    %cst_20 = arith.constant dense<0.000000e+00> : vector<8xf32>
    %26 = vector.multi_reduction <add>, %25, %cst_20 [1] : vector<8x8xf32> to vector<8xf32>
    %27 = vector.shape_cast %26 : vector<8xf32> to vector<8x1xf32>
    %28 = tpu.reciprocal %27 {approx = true} : vector<8x1xf32> -> vector<8x1xf32>
    %29 = vector.broadcast %28 : vector<8x1xf32> to vector<8x8xf32>
    %30 = arith.mulf %25, %29 : vector<8x8xf32>
    %cst_21 = arith.constant dense<0.000000e+00> : vector<8x8xf32>
    %31 = tpu.matmul %30, %16, %cst_21 {dimension_numbers = #tpu.dot_dimension_numbers<[1], [0], [0], [1], [0, 0, 1, 1], [], []>} : vector<8x8xf32>, vector<8x8xf32>, vector<8x8xf32> -> vector<8x8xf32>
    %32 = vector.extract_strided_slice %6 {offsets = [0, 8], sizes = [8, 8], strides = [1, 1]} : vector<8x32xf32> to vector<8x8xf32>
    %33 = vector.extract_strided_slice %8 {offsets = [0, 8], sizes = [8, 8], strides = [1, 1]} : vector<8x32xf32> to vector<8x8xf32>
    %34 = vector.extract_strided_slice %13 {offsets = [0, 8], sizes = [8, 8], strides = [1, 1]} : vector<8x32xf32> to vector<8x8xf32>
    %cst_22 = arith.constant dense<0.000000e+00> : vector<8x8xf32>
    %35 = tpu.matmul %32, %33, %cst_22 {dimension_numbers = #tpu.dot_dimension_numbers<[1], [1], [0], [0], [0, 0, 1, 0], [], []>} : vector<8x8xf32>, vector<8x8xf32>, vector<8x8xf32> -> vector<8x8xf32>
    %c0_23 = arith.constant 0 : index
    %c1 = arith.constant 1 : index
    %c0_24 = arith.constant 0 : index
    %c0_25 = arith.constant 0 : index
    %36 = vector.load %arg7[%c0_23, %c1, %c0_24, %c0_25] : memref<1x4x8x8xf32, #tpu.memory_space<vmem>>, vector<1x1x8x8xf32>
    %37 = vector.shape_cast %36 : vector<1x1x8x8xf32> to vector<8x8xf32>
    %38 = arith.addf %35, %37 : vector<8x8xf32>
    %cst_26 = arith.constant dense<0xFF800000> : vector<8xf32>
    %39 = vector.multi_reduction <maximumf>, %38, %cst_26 [1] : vector<8x8xf32> to vector<8xf32>
    %40 = vector.shape_cast %39 : vector<8xf32> to vector<8x1xf32>
    %41 = vector.broadcast %40 : vector<8x1xf32> to vector<8x8xf32>
    %42 = arith.subf %38, %41 : vector<8x8xf32>
    %43 = math.exp %42 : vector<8x8xf32>
    %cst_27 = arith.constant dense<0.000000e+00> : vector<8xf32>
    %44 = vector.multi_reduction <add>, %43, %cst_27 [1] : vector<8x8xf32> to vector<8xf32>
    %45 = vector.shape_cast %44 : vector<8xf32> to vector<8x1xf32>
    %46 = tpu.reciprocal %45 {approx = true} : vector<8x1xf32> -> vector<8x1xf32>
    %47 = vector.broadcast %46 : vector<8x1xf32> to vector<8x8xf32>
    %48 = arith.mulf %43, %47 : vector<8x8xf32>
    %cst_28 = arith.constant dense<0.000000e+00> : vector<8x8xf32>
    %49 = tpu.matmul %48, %34, %cst_28 {dimension_numbers = #tpu.dot_dimension_numbers<[1], [0], [0], [1], [0, 0, 1, 1], [], []>} : vector<8x8xf32>, vector<8x8xf32>, vector<8x8xf32> -> vector<8x8xf32>
    %50 = vector.extract_strided_slice %6 {offsets = [0, 16], sizes = [8, 8], strides = [1, 1]} : vector<8x32xf32> to vector<8x8xf32>
    %51 = vector.extract_strided_slice %8 {offsets = [0, 16], sizes = [8, 8], strides = [1, 1]} : vector<8x32xf32> to vector<8x8xf32>
    %52 = vector.extract_strided_slice %13 {offsets = [0, 16], sizes = [8, 8], strides = [1, 1]} : vector<8x32xf32> to vector<8x8xf32>
    %cst_29 = arith.constant dense<0.000000e+00> : vector<8x8xf32>
    %53 = tpu.matmul %50, %51, %cst_29 {dimension_numbers = #tpu.dot_dimension_numbers<[1], [1], [0], [0], [0, 0, 1, 0], [], []>} : vector<8x8xf32>, vector<8x8xf32>, vector<8x8xf32> -> vector<8x8xf32>
    %c0_30 = arith.constant 0 : index
    %c2 = arith.constant 2 : index
    %c0_31 = arith.constant 0 : index
    %c0_32 = arith.constant 0 : index
    %54 = vector.load %arg7[%c0_30, %c2, %c0_31, %c0_32] : memref<1x4x8x8xf32, #tpu.memory_space<vmem>>, vector<1x1x8x8xf32>
    %55 = vector.shape_cast %54 : vector<1x1x8x8xf32> to vector<8x8xf32>
    %56 = arith.addf %53, %55 : vector<8x8xf32>
    %cst_33 = arith.constant dense<0xFF800000> : vector<8xf32>
    %57 = vector.multi_reduction <maximumf>, %56, %cst_33 [1] : vector<8x8xf32> to vector<8xf32>
    %58 = vector.shape_cast %57 : vector<8xf32> to vector<8x1xf32>
    %59 = vector.broadcast %58 : vector<8x1xf32> to vector<8x8xf32>
    %60 = arith.subf %56, %59 : vector<8x8xf32>
    %61 = math.exp %60 : vector<8x8xf32>
    %cst_34 = arith.constant dense<0.000000e+00> : vector<8xf32>
    %62 = vector.multi_reduction <add>, %61, %cst_34 [1] : vector<8x8xf32> to vector<8xf32>
    %63 = vector.shape_cast %62 : vector<8xf32> to vector<8x1xf32>
    %64 = tpu.reciprocal %63 {approx = true} : vector<8x1xf32> -> vector<8x1xf32>
    %65 = vector.broadcast %64 : vector<8x1xf32> to vector<8x8xf32>
    %66 = arith.mulf %61, %65 : vector<8x8xf32>
    %cst_35 = arith.constant dense<0.000000e+00> : vector<8x8xf32>
    %67 = tpu.matmul %66, %52, %cst_35 {dimension_numbers = #tpu.dot_dimension_numbers<[1], [0], [0], [1], [0, 0, 1, 1], [], []>} : vector<8x8xf32>, vector<8x8xf32>, vector<8x8xf32> -> vector<8x8xf32>
    %68 = vector.extract_strided_slice %6 {offsets = [0, 24], sizes = [8, 8], strides = [1, 1]} : vector<8x32xf32> to vector<8x8xf32>
    %69 = vector.extract_strided_slice %8 {offsets = [0, 24], sizes = [8, 8], strides = [1, 1]} : vector<8x32xf32> to vector<8x8xf32>
    %70 = vector.extract_strided_slice %13 {offsets = [0, 24], sizes = [8, 8], strides = [1, 1]} : vector<8x32xf32> to vector<8x8xf32>
    %cst_36 = arith.constant dense<0.000000e+00> : vector<8x8xf32>
    %71 = tpu.matmul %68, %69, %cst_36 {dimension_numbers = #tpu.dot_dimension_numbers<[1], [1], [0], [0], [0, 0, 1, 0], [], []>} : vector<8x8xf32>, vector<8x8xf32>, vector<8x8xf32> -> vector<8x8xf32>
    %c0_37 = arith.constant 0 : index
    %c3 = arith.constant 3 : index
    %c0_38 = arith.constant 0 : index
    %c0_39 = arith.constant 0 : index
    %72 = vector.load %arg7[%c0_37, %c3, %c0_38, %c0_39] : memref<1x4x8x8xf32, #tpu.memory_space<vmem>>, vector<1x1x8x8xf32>
    %73 = vector.shape_cast %72 : vector<1x1x8x8xf32> to vector<8x8xf32>
    %74 = arith.addf %71, %73 : vector<8x8xf32>
    %cst_40 = arith.constant dense<0xFF800000> : vector<8xf32>
    %75 = vector.multi_reduction <maximumf>, %74, %cst_40 [1] : vector<8x8xf32> to vector<8xf32>
    %76 = vector.shape_cast %75 : vector<8xf32> to vector<8x1xf32>
    %77 = vector.broadcast %76 : vector<8x1xf32> to vector<8x8xf32>
    %78 = arith.subf %74, %77 : vector<8x8xf32>
    %79 = math.exp %78 : vector<8x8xf32>
    %cst_41 = arith.constant dense<0.000000e+00> : vector<8xf32>
    %80 = vector.multi_reduction <add>, %79, %cst_41 [1] : vector<8x8xf32> to vector<8xf32>
    %81 = vector.shape_cast %80 : vector<8xf32> to vector<8x1xf32>
    %82 = tpu.reciprocal %81 {approx = true} : vector<8x1xf32> -> vector<8x1xf32>
    %83 = vector.broadcast %82 : vector<8x1xf32> to vector<8x8xf32>
    %84 = arith.mulf %79, %83 : vector<8x8xf32>
    %cst_42 = arith.constant dense<0.000000e+00> : vector<8x8xf32>
    %85 = tpu.matmul %84, %70, %cst_42 {dimension_numbers = #tpu.dot_dimension_numbers<[1], [0], [0], [1], [0, 0, 1, 1], [], []>} : vector<8x8xf32>, vector<8x8xf32>, vector<8x8xf32> -> vector<8x8xf32>
    %86 = tpu.concatenate %31, %49, %67, %85 in 1 : vector<8x8xf32>, vector<8x8xf32>, vector<8x8xf32>, vector<8x8xf32> -> vector<8x32xf32>
    %c0_43 = arith.constant 0 : index
    %c0_44 = arith.constant 0 : index
    %87 = vector.load %arg8[%c0_43, %c0_44] : memref<32x32xf32, #tpu.memory_space<vmem>>, vector<32x32xf32>
    %cst_45 = arith.constant dense<0.000000e+00> : vector<8x32xf32>
    %88 = tpu.matmul %86, %87, %cst_45 {dimension_numbers = #tpu.dot_dimension_numbers<[1], [0], [0], [1], [0, 0, 1, 1], [], []>} : vector<8x32xf32>, vector<32x32xf32>, vector<8x32xf32> -> vector<8x32xf32>
    %c0_46 = arith.constant 0 : index
    %c0_47 = arith.constant 0 : index
    %89 = vector.load %arg9[%c0_46, %c0_47] : memref<1x32xf32, #tpu.memory_space<vmem>>, vector<1x32xf32>
    %90 = vector.broadcast %89 : vector<1x32xf32> to vector<8x32xf32>
    %91 = arith.addf %88, %90 : vector<8x32xf32>
    %92 = arith.addf %91, %1 : vector<8x32xf32>
    %cst_48 = arith.constant dense<0.000000e+00> : vector<8xf32>
    %93 = vector.multi_reduction <add>, %92, %cst_48 [1] : vector<8x32xf32> to vector<8xf32>
    %94 = vector.shape_cast %93 : vector<8xf32> to vector<8x1xf32>
    %cst_49 = arith.constant 3.200000e+01 : f32
    %95 = vector.broadcast %cst_49 : f32 to vector<8x1xf32>
    %96 = arith.divf %94, %95 : vector<8x1xf32>
    %97 = vector.broadcast %96 : vector<8x1xf32> to vector<8x32xf32>
    %98 = arith.subf %92, %97 : vector<8x32xf32>
    %99 = arith.mulf %98, %98 : vector<8x32xf32>
    %cst_50 = arith.constant dense<0.000000e+00> : vector<8xf32>
    %100 = vector.multi_reduction <add>, %99, %cst_50 [1] : vector<8x32xf32> to vector<8xf32>
    %101 = vector.shape_cast %100 : vector<8xf32> to vector<8x1xf32>
    %cst_51 = arith.constant 3.200000e+01 : f32
    %102 = vector.broadcast %cst_51 : f32 to vector<8x1xf32>
    %103 = arith.divf %101, %102 : vector<8x1xf32>
    %104 = vector.broadcast %96 : vector<8x1xf32> to vector<8x32xf32>
    %105 = arith.subf %92, %104 : vector<8x32xf32>
    %cst_52 = arith.constant 9.99999996E-13 : f32
    %106 = vector.broadcast %cst_52 : f32 to vector<8x1xf32>
    %107 = arith.addf %103, %106 : vector<8x1xf32>
    %108 = math.rsqrt %107 : vector<8x1xf32>
    %109 = vector.broadcast %108 : vector<8x1xf32> to vector<8x32xf32>
    %110 = arith.mulf %105, %109 : vector<8x32xf32>
    %c0_53 = arith.constant 0 : index
    %c0_54 = arith.constant 0 : index
    %111 = vector.load %arg10[%c0_53, %c0_54] : memref<1x32xf32, #tpu.memory_space<vmem>>, vector<1x32xf32>
    %112 = vector.broadcast %111 : vector<1x32xf32> to vector<8x32xf32>
    %113 = arith.mulf %110, %112 : vector<8x32xf32>
    %c0_55 = arith.constant 0 : index
    %c0_56 = arith.constant 0 : index
    %114 = vector.load %arg11[%c0_55, %c0_56] : memref<1x32xf32, #tpu.memory_space<vmem>>, vector<1x32xf32>
    %115 = vector.broadcast %114 : vector<1x32xf32> to vector<8x32xf32>
    %116 = arith.addf %113, %115 : vector<8x32xf32>
    %c0_57 = arith.constant 0 : index
    %c0_58 = arith.constant 0 : index
    %c0_59 = arith.constant 0 : index
    %117 = vector.load %arg12[%c0_57, %c0_58, %c0_59] : memref<1x8x32xf32, #tpu.memory_space<vmem>>, vector<1x8x32xf32>
    %118 = vector.shape_cast %117 : vector<1x8x32xf32> to vector<8x32xf32>
    %119 = vector.shape_cast %116 : vector<8x32xf32> to vector<1x8x32xf32>
    tpu.vector_store %arg12[%c0_57, %c0_58, %c0_59], %119 {strides = array<i32>} : memref<1x8x32xf32, #tpu.memory_space<vmem>>, vector<1x8x32xf32>,
    return
  }
  func.func @transform_0(%arg0: i32) -> (i32, i32, i32) {
    %c0_i32 = arith.constant 0 : i32
    %c0_i32_0 = arith.constant 0 : i32
    %c0_i32_1 = arith.constant 0 : i32
    return %arg0, %c0_i32, %c0_i32_0 : i32, i32, i32
  }
  func.func @transform_1(%arg0: i32) -> (i32, i32) {
    %c0_i32 = arith.constant 0 : i32
    %c0_i32_0 = arith.constant 0 : i32
    %c0_i32_1 = arith.constant 0 : i32
    return %c0_i32, %c0_i32_0 : i32, i32
  }
  func.func @transform_2(%arg0: i32) -> (i32, i32) {
    %c0_i32 = arith.constant 0 : i32
    %c0_i32_0 = arith.constant 0 : i32
    %c0_i32_1 = arith.constant 0 : i32
    return %c0_i32, %c0_i32_0 : i32, i32
  }
  func.func @transform_3(%arg0: i32) -> (i32, i32) {
    %c0_i32 = arith.constant 0 : i32
    %c0_i32_0 = arith.constant 0 : i32
    %c0_i32_1 = arith.constant 0 : i32
    return %c0_i32, %c0_i32_0 : i32, i32
  }
  func.func @transform_4(%arg0: i32) -> (i32, i32) {
    %c0_i32 = arith.constant 0 : i32
    %c0_i32_0 = arith.constant 0 : i32
    %c0_i32_1 = arith.constant 0 : i32
    return %c0_i32, %c0_i32_0 : i32, i32
  }
  func.func @transform_5(%arg0: i32) -> (i32, i32) {
    %c0_i32 = arith.constant 0 : i32
    %c0_i32_0 = arith.constant 0 : i32
    %c0_i32_1 = arith.constant 0 : i32
    return %c0_i32, %c0_i32_0 : i32, i32
  }
  func.func @transform_6(%arg0: i32) -> (i32, i32, i32, i32) {
    %c0_i32 = arith.constant 0 : i32
    %c0_i32_0 = arith.constant 0 : i32
    %c0_i32_1 = arith.constant 0 : i32
    %c0_i32_2 = arith.constant 0 : i32
    return %arg0, %c0_i32, %c0_i32_0, %c0_i32_1 : i32, i32, i32, i32
  }
  func.func @transform_7(%arg0: i32) -> (i32, i32) {
    %c0_i32 = arith.constant 0 : i32
    %c0_i32_0 = arith.constant 0 : i32
    %c0_i32_1 = arith.constant 0 : i32
    return %c0_i32, %c0_i32_0 : i32, i32
  }
  func.func @transform_8(%arg0: i32) -> (i32, i32) {
    %c0_i32 = arith.constant 0 : i32
    %c0_i32_0 = arith.constant 0 : i32
    %c0_i32_1 = arith.constant 0 : i32
    return %c0_i32, %c0_i32_0 : i32, i32
  }
  func.func @transform_9(%arg0: i32) -> (i32, i32) {
    %c0_i32 = arith.constant 0 : i32
    %c0_i32_0 = arith.constant 0 : i32
    %c0_i32_1 = arith.constant 0 : i32
    return %c0_i32, %c0_i32_0 : i32, i32
  }
  func.func @transform_10(%arg0: i32) -> (i32, i32) {
    %c0_i32 = arith.constant 0 : i32
    %c0_i32_0 = arith.constant 0 : i32
    %c0_i32_1 = arith.constant 0 : i32
    return %c0_i32, %c0_i32_0 : i32, i32
  }
  func.func @transform_11(%arg0: i32) -> (i32, i32, i32) {
    %c0_i32 = arith.constant 0 : i32
    %c0_i32_0 = arith.constant 0 : i32
    %c0_i32_1 = arith.constant 0 : i32
    return %arg0, %c0_i32, %c0_i32_0 : i32, i32, i32
  }
}

</mosaic_0001>

<llo_original>
// kernel: tpu_custom_call.1
$region0: #{tpu_custom_call.1}
  #allocation0 [shape = 'u32[]', space=smem, size = 0x4, offset = 0x4, fixed_abs, tag = 'smem constant byte address 0x4 - core index']
  #allocation1 [shape = 'u32[144,128]{1,0:T(1,128)}', space=vmem, size = 0x12000, scoped, tag = 'internal scratch']
  %s0 = inlined_call_operand.hbm [shape: f32[2,8,32], index: 0, kind: input, shape index: {}]
  %s1 = inlined_call_operand.hbm [shape: f32[32,32], index: 1, kind: input, shape index: {}]
  %s2 = inlined_call_operand.hbm [shape: f32[32,32], index: 2, kind: input, shape index: {}]
  %s3 = inlined_call_operand.hbm [shape: f32[32,32], index: 3, kind: input, shape index: {}]
  %s4 = inlined_call_operand.vmem [shape: f32[1,32], index: 4, kind: input, shape index: {}]
  %s5 = inlined_call_operand.vmem [shape: f32[1,32], index: 5, kind: input, shape index: {}]
  %s6 = inlined_call_operand.hbm [shape: f32[2,4,8,8], index: 6, kind: input, shape index: {}]
  %s7 = inlined_call_operand.hbm [shape: f32[32,32], index: 7, kind: input, shape index: {}]
  %s8 = inlined_call_operand.vmem [shape: f32[1,32], index: 8, kind: input, shape index: {}]
  %s9 = inlined_call_operand.vmem [shape: f32[1,32], index: 9, kind: input, shape index: {}]
  %s10 = inlined_call_operand.vmem [shape: f32[1,32], index: 10, kind: input, shape index: {}]
  %s11 = inlined_call_operand.hbm [shape: f32[2,8,32], index: 11, kind: output, shape index: {}]
  %s12 = sld [smem:[#allocation0]]
  $region101: #{tpu_custom_call.1} parent=0
    _
  %s14 = ssub.s32 1, %s12
  %s15 = scalar_select 0, %s14, %s12
  $region1: #{tpu_custom_call.1} parent=0
    #allocation2 [shape = 'u8[8192]{0}', space=vmem, size = 0x2000, scoped, tag = 'input window, operand 0']
    #allocation3 [shape = 's32[2]{0}', space=sflag, size = 0x8, scoped, tag = 'scoped memory for tpu_custom_call.1']
    #allocation4 [shape = 's32[2]{0}', space=sflag, size = 0x8, scoped, tag = 'scoped memory for tpu_custom_call.1']
    #allocation5 [shape = 'u8[16384]{0}', space=vmem, size = 0x4000, scoped, tag = 'input window, operand 1, single buffered']
    #allocation6 [shape = 's32[1]{0}', space=sflag, size = 0x4, scoped, tag = 'scoped memory for tpu_custom_call.1']
    #allocation7 [shape = 'u8[16384]{0}', space=vmem, size = 0x4000, scoped, tag = 'input window, operand 2, single buffered']
    #allocation8 [shape = 'u8[16384]{0}', space=vmem, size = 0x4000, scoped, tag = 'input window, operand 3, single buffered']
    #allocation9 [shape = 's32[1]{0}', space=sflag, size = 0x4, scoped, tag = 'scoped memory for tpu_custom_call.1']
    #allocation10 [shape = 'u8[32768]{0}', space=vmem, size = 0x8000, scoped, tag = 'input window, operand 6']
    #allocation11 [shape = 'u8[16384]{0}', space=vmem, size = 0x4000, scoped, tag = 'input window, operand 7, single buffered']
    #allocation12 [shape = 'u8[8192]{0}', space=vmem, size = 0x2000, scoped, tag = 'output window, operand 0']
    %16 = vsyncpa [#allocation3], 0
    %s17 = scalar_lea.sflag [#allocation3], 1
    %18 = vsyncpa %s17, 0
    %19 = vsyncpa [#allocation6], 0
    %20 = vsyncpa [#allocation9], 0
    %21 = vsyncpa [#allocation4], 0
    %s22 = scalar_lea.sflag [#allocation4], 1
    %23 = vsyncpa %s22, 0
    loop: start=0, step=1, limit=4
    $region2: #{tpu_custom_call.1} parent=1 // loop_pre_header
      _
    $region3: #{tpu_custom_call.1} parent=1 // loop_header
      %s25 = sphi 0, %s29
      %p26 = scmp.ge.s32.totalorder %s25, 4
      %s35 = sphi 0, %s37
      %s38 = sphi 0, %s35
      %s39 = sphi 0, %s38
      %s55 = sphi 0, %s39
      %s59 = sphi 0, %s59
      %s61 = sphi 0, %s59
      %s62 = sphi 0, %s61
      %s76 = sphi 0, %s62
      %s80 = sphi 0, %s80
      %s82 = sphi 0, %s80
      %s83 = sphi 0, %s82
      %s97 = sphi 0, %s83
      %s101 = sphi 0, %s101
      %s103 = sphi 0, %s101
      %s104 = sphi 0, %s103
      %s118 = sphi 0, %s104
      %s122 = sphi 0, %s122
      %s124 = sphi 0, %s122
      %s125 = sphi 0, %s124
      %s139 = sphi 0, %s125
      %s143 = sphi 0, %s143
      %s145 = sphi 0, %s143
      %s146 = sphi 0, %s145
      %s160 = sphi 0, %s146
      %s166 = sphi 0, %s168
      %s169 = sphi 0, %s166
      %s170 = sphi 0, %s169
      %s186 = sphi 0, %s170
      %s190 = sphi 0, %s190
      %s192 = sphi 0, %s190
      %s193 = sphi 0, %s192
      %s207 = sphi 0, %s193
      %s211 = sphi 0, %s211
      %s213 = sphi 0, %s211
      %s214 = sphi 0, %s213
      %s228 = sphi 0, %s214
      %s232 = sphi 0, %s232
      %s234 = sphi 0, %s232
      %s235 = sphi 0, %s234
      %s249 = sphi 0, %s235
      %s253 = sphi 0, %s253
      %s255 = sphi 0, %s253
      %s256 = sphi 0, %s255
      %s270 = sphi 0, %s256
      %s276 = sphi 0, %s278
      %s279 = sphi 0, %s276
      %s280 = sphi 0, %s279
      %s296 = sphi 0, %s280
    $region4: #{tpu_custom_call.1} parent=1 // loop_header_branch
      %28 = sbr.rel (%p26) target = $region8
    $region5: #{tpu_custom_call.1} parent=1 // loop_body
      %s30 = ssub.s32 %s25, 1
      %s31 = ssub.s32 %s25, 2
      %s32 = sadd.s32 %s25, 1
      %s33 = ssub.s32 %s25, %s32
      %p34 = scmp.eq.s32.totalorder %s33, 0
      %s36 = sadd.s32 %s35, 1
      %s37 = scalar_select %p34, %s35, %s36
      %p40 = pneg %p34
      %p41 = scmp.eq.s32.totalorder %s25, 1
      %p42 = por %p40, %p41
      %p43 = scmp.ne.s32.totalorder %s35, %s38
      %p44 = scmp.eq.s32.totalorder %s25, 0
      %p45 = por %p43, %p44
      %p46 = scmp.ne.s32.totalorder %s35, %s38
      %p47 = scmp.eq.s32.totalorder %s30, 1
      %p48 = por %p46, %p47
      %p49 = scmp.ne.s32.totalorder %s38, %s39
      %p50 = scmp.eq.s32.totalorder %s30, 0
      %p51 = por %p49, %p50
      %p52 = scmp.ne.s32.totalorder %s38, %s39
      %p53 = scmp.eq.s32.totalorder %s31, 1
      %p54 = por %p52, %p53
      %p56 = scmp.ne.s32.totalorder %s39, %s55
      %p57 = scmp.eq.s32.totalorder %s31, 0
      %p58 = por %p56, %p57
      %s60 = sadd.s32 %s59, 1
      %p63 = scmp.eq.s32.totalorder %s25, 1
      %p64 = scmp.ne.s32.totalorder %s59, %s61
      %p65 = scmp.eq.s32.totalorder %s25, 0
      %p66 = por %p64, %p65
      %p67 = scmp.ne.s32.totalorder %s59, %s61
      %p68 = scmp.eq.s32.totalorder %s30, 1
      %p69 = por %p67, %p68
      %p70 = scmp.ne.s32.totalorder %s61, %s62
      %p71 = scmp.eq.s32.totalorder %s30, 0
      %p72 = por %p70, %p71
      %p73 = scmp.ne.s32.totalorder %s61, %s62
      %p74 = scmp.eq.s32.totalorder %s31, 1
      %p75 = por %p73, %p74
      %p77 = scmp.ne.s32.totalorder %s62, %s76
      %p78 = scmp.eq.s32.totalorder %s31, 0
      %p79 = por %p77, %p78
      %s81 = sadd.s32 %s80, 1
      %p84 = scmp.eq.s32.totalorder %s25, 1
      %p85 = scmp.ne.s32.totalorder %s80, %s82
      %p86 = scmp.eq.s32.totalorder %s25, 0
      %p87 = por %p85, %p86
      %p88 = scmp.ne.s32.totalorder %s80, %s82
      %p89 = scmp.eq.s32.totalorder %s30, 1
      %p90 = por %p88, %p89
      %p91 = scmp.ne.s32.totalorder %s82, %s83
      %p92 = scmp.eq.s32.totalorder %s30, 0
      %p93 = por %p91, %p92
      %p94 = scmp.ne.s32.totalorder %s82, %s83
      %p95 = scmp.eq.s32.totalorder %s31, 1
      %p96 = por %p94, %p95
      %p98 = scmp.ne.s32.totalorder %s83, %s97
      %p99 = scmp.eq.s32.totalorder %s31, 0
      %p100 = por %p98, %p99
      %s102 = sadd.s32 %s101, 1
      %p105 = scmp.eq.s32.totalorder %s25, 1
      %p106 = scmp.ne.s32.totalorder %s101, %s103
      %p107 = scmp.eq.s32.totalorder %s25, 0
      %p108 = por %p106, %p107
      %p109 = scmp.ne.s32.totalorder %s101, %s103
      %p110 = scmp.eq.s32.totalorder %s30, 1
      %p111 = por %p109, %p110
      %p112 = scmp.ne.s32.totalorder %s103, %s104
      %p113 = scmp.eq.s32.totalorder %s30, 0
      %p114 = por %p112, %p113
      %p115 = scmp.ne.s32.totalorder %s103, %s104
      %p116 = scmp.eq.s32.totalorder %s31, 1
      %p117 = por %p115, %p116
      %p119 = scmp.ne.s32.totalorder %s104, %s118
      %p120 = scmp.eq.s32.totalorder %s31, 0
      %p121 = por %p119, %p120
      %s123 = sadd.s32 %s122, 1
      %p126 = scmp.eq.s32.totalorder %s25, 1
      %p127 = scmp.ne.s32.totalorder %s122, %s124
      %p128 = scmp.eq.s32.totalorder %s25, 0
      %p129 = por %p127, %p128
      %p130 = scmp.ne.s32.totalorder %s122, %s124
      %p131 = scmp.eq.s32.totalorder %s30, 1
      %p132 = por %p130, %p131
      %p133 = scmp.ne.s32.totalorder %s124, %s125
      %p134 = scmp.eq.s32.totalorder %s30, 0
      %p135 = por %p133, %p134
      %p136 = scmp.ne.s32.totalorder %s124, %s125
      %p137 = scmp.eq.s32.totalorder %s31, 1
      %p138 = por %p136, %p137
      %p140 = scmp.ne.s32.totalorder %s125, %s139
      %p141 = scmp.eq.s32.totalorder %s31, 0
      %p142 = por %p140, %p141
      %s144 = sadd.s32 %s143, 1
      %p147 = scmp.eq.s32.totalorder %s25, 1
      %p148 = scmp.ne.s32.totalorder %s143, %s145
      %p149 = scmp.eq.s32.totalorder %s25, 0
      %p150 = por %p148, %p149
      %p151 = scmp.ne.s32.totalorder %s143, %s145
      %p152 = scmp.eq.s32.totalorder %s30, 1
      %p153 = por %p151, %p152
      %p154 = scmp.ne.s32.totalorder %s145, %s146
      %p155 = scmp.eq.s32.totalorder %s30, 0
      %p156 = por %p154, %p155
      %p157 = scmp.ne.s32.totalorder %s145, %s146
      %p158 = scmp.eq.s32.totalorder %s31, 1
      %p159 = por %p157, %p158
      %p161 = scmp.ne.s32.totalorder %s146, %s160
      %p162 = scmp.eq.s32.totalorder %s31, 0
      %p163 = por %p161, %p162
      %s164 = ssub.s32 %s25, %s32
      %p165 = scmp.eq.s32.totalorder %s164, 0
      %s167 = sadd.s32 %s166, 1
      %s168 = scalar_select %p165, %s166, %s167
      %p171 = pneg %p165
      %p172 = scmp.eq.s32.totalorder %s25, 1
      %p173 = por %p171, %p172
      %p174 = scmp.ne.s32.totalorder %s166, %s169
      %p175 = scmp.eq.s32.totalorder %s25, 0
      %p176 = por %p174, %p175
      %p177 = scmp.ne.s32.totalorder %s166, %s169
      %p178 = scmp.eq.s32.totalorder %s30, 1
      %p179 = por %p177, %p178
      %p180 = scmp.ne.s32.totalorder %s169, %s170
      %p181 = scmp.eq.s32.totalorder %s30, 0
      %p182 = por %p180, %p181
      %p183 = scmp.ne.s32.totalorder %s169, %s170
      %p184 = scmp.eq.s32.totalorder %s31, 1
      %p185 = por %p183, %p184
      %p187 = scmp.ne.s32.totalorder %s170, %s186
      %p188 = scmp.eq.s32.totalorder %s31, 0
      %p189 = por %p187, %p188
      %s191 = sadd.s32 %s190, 1
      %p194 = scmp.eq.s32.totalorder %s25, 1
      %p195 = scmp.ne.s32.totalorder %s190, %s192
      %p196 = scmp.eq.s32.totalorder %s25, 0
      %p197 = por %p195, %p196
      %p198 = scmp.ne.s32.totalorder %s190, %s192
      %p199 = scmp.eq.s32.totalorder %s30, 1
      %p200 = por %p198, %p199
      %p201 = scmp.ne.s32.totalorder %s192, %s193
      %p202 = scmp.eq.s32.totalorder %s30, 0
      %p203 = por %p201, %p202
      %p204 = scmp.ne.s32.totalorder %s192, %s193
      %p205 = scmp.eq.s32.totalorder %s31, 1
      %p206 = por %p204, %p205
      %p208 = scmp.ne.s32.totalorder %s193, %s207
      %p209 = scmp.eq.s32.totalorder %s31, 0
      %p210 = por %p208, %p209
      %s212 = sadd.s32 %s211, 1
      %p215 = scmp.eq.s32.totalorder %s25, 1
      %p216 = scmp.ne.s32.totalorder %s211, %s213
      %p217 = scmp.eq.s32.totalorder %s25, 0
      %p218 = por %p216, %p217
      %p219 = scmp.ne.s32.totalorder %s211, %s213
      %p220 = scmp.eq.s32.totalorder %s30, 1
      %p221 = por %p219, %p220
      %p222 = scmp.ne.s32.totalorder %s213, %s214
      %p223 = scmp.eq.s32.totalorder %s30, 0
      %p224 = por %p222, %p223
      %p225 = scmp.ne.s32.totalorder %s213, %s214
      %p226 = scmp.eq.s32.totalorder %s31, 1
      %p227 = por %p225, %p226
      %p229 = scmp.ne.s32.totalorder %s214, %s228
      %p230 = scmp.eq.s32.totalorder %s31, 0
      %p231 = por %p229, %p230
      %s233 = sadd.s32 %s232, 1
      %p236 = scmp.eq.s32.totalorder %s25, 1
      %p237 = scmp.ne.s32.totalorder %s232, %s234
      %p238 = scmp.eq.s32.totalorder %s25, 0
      %p239 = por %p237, %p238
      %p240 = scmp.ne.s32.totalorder %s232, %s234
      %p241 = scmp.eq.s32.totalorder %s30, 1
      %p242 = por %p240, %p241
      %p243 = scmp.ne.s32.totalorder %s234, %s235
      %p244 = scmp.eq.s32.totalorder %s30, 0
      %p245 = por %p243, %p244
      %p246 = scmp.ne.s32.totalorder %s234, %s235
      %p247 = scmp.eq.s32.totalorder %s31, 1
      %p248 = por %p246, %p247
      %p250 = scmp.ne.s32.totalorder %s235, %s249
      %p251 = scmp.eq.s32.totalorder %s31, 0
      %p252 = por %p250, %p251
      %s254 = sadd.s32 %s253, 1
      %p257 = scmp.eq.s32.totalorder %s25, 1
      %p258 = scmp.ne.s32.totalorder %s253, %s255
      %p259 = scmp.eq.s32.totalorder %s25, 0
      %p260 = por %p258, %p259
      %p261 = scmp.ne.s32.totalorder %s253, %s255
      %p262 = scmp.eq.s32.totalorder %s30, 1
      %p263 = por %p261, %p262
      %p264 = scmp.ne.s32.totalorder %s255, %s256
      %p265 = scmp.eq.s32.totalorder %s30, 0
      %p266 = por %p264, %p265
      %p267 = scmp.ne.s32.totalorder %s255, %s256
      %p268 = scmp.eq.s32.totalorder %s31, 1
      %p269 = por %p267, %p268
      %p271 = scmp.ne.s32.totalorder %s256, %s270
      %p272 = scmp.eq.s32.totalorder %s31, 0
      %p273 = por %p271, %p272
      %s274 = ssub.s32 %s25, %s32
      %p275 = scmp.eq.s32.totalorder %s274, 0
      %s277 = sadd.s32 %s276, 1
      %s278 = scalar_select %p275, %s276, %s277
      %p281 = pneg %p275
      %p282 = scmp.eq.s32.totalorder %s25, 1
      %p283 = por %p281, %p282
      %p284 = scmp.ne.s32.totalorder %s276, %s279
      %p285 = scmp.eq.s32.totalorder %s25, 0
      %p286 = por %p284, %p285
      %p287 = scmp.ne.s32.totalorder %s276, %s279
      %p288 = scmp.eq.s32.totalorder %s30, 1
      %p289 = por %p287, %p288
      %p290 = scmp.ne.s32.totalorder %s279, %s280
      %p291 = scmp.eq.s32.totalorder %s30, 0
      %p292 = por %p290, %p291
      %p293 = scmp.ne.s32.totalorder %s279, %s280
      %p294 = scmp.eq.s32.totalorder %s31, 1
      %p295 = por %p293, %p294
      %p297 = scmp.ne.s32.totalorder %s280, %s296
      %p298 = scmp.eq.s32.totalorder %s31, 0
      %p299 = por %p297, %p298
      %p300 = scmp.le.s32.totalorder 1, %s25
      %p301 = scmp.lt.s32.totalorder %s25, 3
      %p302 = pnand %p300, %p301
      %p303 = pneg %p302
      // Predicated region
      $region9: #{tpu_custom_call.1} parent=5 // pred_check
        _
      $region10: #{tpu_custom_call.1} parent=5 // pred_check_branch
        %305 = sbr.rel (%p302) target = $region12
      $region11: #{tpu_custom_call.1} parent=5 // pred_region
        %s306 = ssub.s32 %s25, 1
        // Predicated region
        $region13: #{tpu_custom_call.1} parent=11 // pred_check
          %p307 = pneg %p72
        $region14: #{tpu_custom_call.1} parent=11 // pred_check_branch
          %309 = sbr.rel (%p307) target = $region16
        $region15: #{tpu_custom_call.1} parent=11 // pred_region
          %s311 = ssub.s32 512, 512
          %312 = vsyncadd [#allocation6], %s311
          %s313 = sshll.u32 [#allocation5], 4
          %s314 = int_to_ptr.vmem [resolvable:$true] %s313
          %319 = dma.hbm_to_vmem [thread:$0]  %s1, 512, %s314, [#allocation6], 128, 128, 8
        $region16: #{tpu_custom_call.1} parent=11 // pred_fallthru
          _
        // Predicated region
        $region17: #{tpu_custom_call.1} parent=11 // pred_check
          %p320 = pneg %p93
        $region18: #{tpu_custom_call.1} parent=11 // pred_check_branch
          %322 = sbr.rel (%p320) target = $region20
        $region19: #{tpu_custom_call.1} parent=11 // pred_region
          %s324 = ssub.s32 512, 512
          %325 = vsyncadd [#allocation6], %s324
          %s326 = sshll.u32 [#allocation7], 4
          %s327 = int_to_ptr.vmem [resolvable:$true] %s326
          %332 = dma.hbm_to_vmem [thread:$0]  %s2, 512, %s327, [#allocation6], 128, 128, 8
        $region20: #{tpu_custom_call.1} parent=11 // pred_fallthru
          _
        // Predicated region
        $region21: #{tpu_custom_call.1} parent=11 // pred_check
          %p333 = pneg %p114
        $region22: #{tpu_custom_call.1} parent=11 // pred_check_branch
          %335 = sbr.rel (%p333) target = $region24
        $region23: #{tpu_custom_call.1} parent=11 // pred_region
          %s337 = ssub.s32 512, 512
          %338 = vsyncadd [#allocation9], %s337
          %s339 = sshll.u32 [#allocation8], 4
          %s340 = int_to_ptr.vmem [resolvable:$true] %s339
          %345 = dma.hbm_to_vmem [thread:$0]  %s3, 512, %s340, [#allocation9], 128, 128, 8
        $region24: #{tpu_custom_call.1} parent=11 // pred_fallthru
          _
        // Predicated region
        $region25: #{tpu_custom_call.1} parent=11 // pred_check
          %p346 = pneg %p135
        $region26: #{tpu_custom_call.1} parent=11 // pred_check_branch
          %348 = sbr.rel (%p346) target = $region28
        $region27: #{tpu_custom_call.1} parent=11 // pred_region
          _
        $region28: #{tpu_custom_call.1} parent=11 // pred_fallthru
          _
        // Predicated region
        $region29: #{tpu_custom_call.1} parent=11 // pred_check
          %p349 = pneg %p156
        $region30: #{tpu_custom_call.1} parent=11 // pred_check_branch
          %351 = sbr.rel (%p349) target = $region32
        $region31: #{tpu_custom_call.1} parent=11 // pred_region
          _
        $region32: #{tpu_custom_call.1} parent=11 // pred_fallthru
          _
        // Predicated region
        $region33: #{tpu_custom_call.1} parent=11 // pred_check
          %p352 = pneg %p203
        $region34: #{tpu_custom_call.1} parent=11 // pred_check_branch
          %354 = sbr.rel (%p352) target = $region36
        $region35: #{tpu_custom_call.1} parent=11 // pred_region
          %s356 = ssub.s32 512, 512
          %357 = vsyncadd [#allocation6], %s356
          %s358 = sshll.u32 [#allocation11], 4
          %s359 = int_to_ptr.vmem [resolvable:$true] %s358
          %364 = dma.hbm_to_vmem [thread:$0]  %s7, 512, %s359, [#allocation6], 128, 128, 8
        $region36: #{tpu_custom_call.1} parent=11 // pred_fallthru
          _
        // Predicated region
        $region37: #{tpu_custom_call.1} parent=11 // pred_check
          %p365 = pneg %p224
        $region38: #{tpu_custom_call.1} parent=11 // pred_check_branch
          %367 = sbr.rel (%p365) target = $region40
        $region39: #{tpu_custom_call.1} parent=11 // pred_region
          _
        $region40: #{tpu_custom_call.1} parent=11 // pred_fallthru
          _
        // Predicated region
        $region41: #{tpu_custom_call.1} parent=11 // pred_check
          %p368 = pneg %p245
        $region42: #{tpu_custom_call.1} parent=11 // pred_check_branch
          %370 = sbr.rel (%p368) target = $region44
        $region43: #{tpu_custom_call.1} parent=11 // pred_region
          _
        $region44: #{tpu_custom_call.1} parent=11 // pred_fallthru
          _
        // Predicated region
        $region45: #{tpu_custom_call.1} parent=11 // pred_check
          %p371 = pneg %p266
        $region46: #{tpu_custom_call.1} parent=11 // pred_check_branch
          %373 = sbr.rel (%p371) target = $region48
        $region47: #{tpu_custom_call.1} parent=11 // pred_region
          _
        $region48: #{tpu_custom_call.1} parent=11 // pred_fallthru
          _
      $region12: #{tpu_custom_call.1} parent=5 // pred_fallthru
        _
      %p374 = scmp.lt.s32.totalorder %s25, 2
      // Predicated region
      $region49: #{tpu_custom_call.1} parent=5 // pred_check
        %p375 = pneg %p374
      $region50: #{tpu_custom_call.1} parent=5 // pred_check_branch
        %377 = sbr.rel (%p375) target = $region52
      $region51: #{tpu_custom_call.1} parent=5 // pred_region
        // Predicated region
        $region53: #{tpu_custom_call.1} parent=51 // pred_check
          %p378 = pneg %p45
        $region54: #{tpu_custom_call.1} parent=51 // pred_check_branch
          %380 = sbr.rel (%p378) target = $region56
        $region55: #{tpu_custom_call.1} parent=51 // pred_region
          %s381 = sand.u32 %s25, 1
          %s382 = scalar_lea.sflag [#allocation3], %s381
          %s383 = sand.u32 %s35, 1
          %s384 = smul.addr %s383, 8
          %s385 = scalar_lea.vmem [#allocation2], %s384
          %s387 = ssub.s32 128, 128
          %388 = vsyncadd %s382, %s387
          %s389 = smul.addr %s25, 128
          %s390 = scalar_lea.hbm %s0, %s389
          %s392 = sshll.u32 %s385, 4
          %s393 = int_to_ptr.vmem [resolvable:$true] %s392
          %395 = dma.hbm_to_vmem [thread:$0]  %s390, 128, %s393, %s382
        $region56: #{tpu_custom_call.1} parent=51 // pred_fallthru
          _
        // Predicated region
        $region57: #{tpu_custom_call.1} parent=51 // pred_check
          %p396 = pneg %p176
        $region58: #{tpu_custom_call.1} parent=51 // pred_check_branch
          %398 = sbr.rel (%p396) target = $region60
        $region59: #{tpu_custom_call.1} parent=51 // pred_region
          %s399 = sand.u32 %s25, 1
          %s400 = scalar_lea.sflag [#allocation3], %s399
          %s401 = sand.u32 %s166, 1
          %s402 = smul.addr %s401, 32
          %s403 = scalar_lea.vmem [#allocation10], %s402
          %s405 = ssub.s32 512, 512
          %406 = vsyncadd %s400, %s405
          %s407 = smul.addr %s25, 4
          %s408 = smul.addr %s407, 128
          %s409 = scalar_lea.hbm %s6, %s408
          %s410 = sshll.u32 %s403, 4
          %s411 = int_to_ptr.vmem [resolvable:$true] %s410
          %416 = dma.hbm_to_vmem [thread:$0]  %s409, 512, %s411, %s400, 128, 128, 8
        $region60: #{tpu_custom_call.1} parent=51 // pred_fallthru
          _
      $region52: #{tpu_custom_call.1} parent=5 // pred_fallthru
        _
      %p417 = scmp.le.s32.totalorder 1, %s25
      %p418 = scmp.lt.s32.totalorder %s25, 3
      %p419 = pnand %p417, %p418
      %p420 = pneg %p419
      // Predicated region
      $region61: #{tpu_custom_call.1} parent=5 // pred_check
        _
      $region62: #{tpu_custom_call.1} parent=5 // pred_check_branch
        %422 = sbr.rel (%p419) target = $region64
      $region63: #{tpu_custom_call.1} parent=5 // pred_region
        %s423 = ssub.s32 %s25, 1
        %s424 = sand.u32 %s30, 1
        %s425 = scalar_lea.sflag [#allocation3], %s424
        %s426 = sand.u32 %s38, 1
        %s427 = smul.addr %s426, 8
        %s428 = scalar_lea.vmem [#allocation2], %s427
        // Predicated region
        $region65: #{tpu_custom_call.1} parent=63 // pred_check
          %p429 = pneg %p51
        $region66: #{tpu_custom_call.1} parent=63 // pred_check_branch
          %431 = sbr.rel (%p429) target = $region68
        $region67: #{tpu_custom_call.1} parent=63 // pred_region
          %432 = dma.done %s425, 128
        $region68: #{tpu_custom_call.1} parent=63 // pred_fallthru
          _
        // Predicated region
        $region69: #{tpu_custom_call.1} parent=63 // pred_check
          %p433 = pneg %p72
        $region70: #{tpu_custom_call.1} parent=63 // pred_check_branch
          %435 = sbr.rel (%p433) target = $region72
        $region71: #{tpu_custom_call.1} parent=63 // pred_region
          %436 = dma.done [#allocation6], 512
        $region72: #{tpu_custom_call.1} parent=63 // pred_fallthru
          _
        // Predicated region
        $region73: #{tpu_custom_call.1} parent=63 // pred_check
          %p437 = pneg %p93
        $region74: #{tpu_custom_call.1} parent=63 // pred_check_branch
          %439 = sbr.rel (%p437) target = $region76
        $region75: #{tpu_custom_call.1} parent=63 // pred_region
          %440 = dma.done [#allocation6], 512
        $region76: #{tpu_custom_call.1} parent=63 // pred_fallthru
          _
        // Predicated region
        $region77: #{tpu_custom_call.1} parent=63 // pred_check
          %p441 = pneg %p114
        $region78: #{tpu_custom_call.1} parent=63 // pred_check_branch
          %443 = sbr.rel (%p441) target = $region80
        $region79: #{tpu_custom_call.1} parent=63 // pred_region
          %444 = dma.done [#allocation9], 512
        $region80: #{tpu_custom_call.1} parent=63 // pred_fallthru
          _
        %s445 = sand.u32 %s30, 1
        %s446 = scalar_lea.sflag [#allocation3], %s445
        %s447 = sand.u32 %s169, 1
        %s448 = smul.addr %s447, 32
        %s449 = scalar_lea.vmem [#allocation10], %s448
        // Predicated region
        $region81: #{tpu_custom_call.1} parent=63 // pred_check
          %p450 = pneg %p182
        $region82: #{tpu_custom_call.1} parent=63 // pred_check_branch
          %452 = sbr.rel (%p450) target = $region84
        $region83: #{tpu_custom_call.1} parent=63 // pred_region
          %453 = dma.done %s446, 512
        $region84: #{tpu_custom_call.1} parent=63 // pred_fallthru
          _
        // Predicated region
        $region85: #{tpu_custom_call.1} parent=63 // pred_check
          %p454 = pneg %p203
        $region86: #{tpu_custom_call.1} parent=63 // pred_check_branch
          %456 = sbr.rel (%p454) target = $region88
        $region87: #{tpu_custom_call.1} parent=63 // pred_region
          %457 = dma.done [#allocation6], 512
        $region88: #{tpu_custom_call.1} parent=63 // pred_fallthru
          _
        %s458 = sand.u32 %s30, 1
        %s459 = scalar_lea.sflag [#allocation3], %s458
        %s460 = sand.u32 %s38, 1
        %s461 = smul.addr %s460, 8
        %s462 = scalar_lea.vmem [#allocation2], %s461
        %p463 = pneg %p51
        %p464 = pneg %p48
        %p465 = pneg %p72
        %p466 = pneg %p69
        %p467 = pneg %p93
        %p468 = pneg %p90
        %p469 = pneg %p114
        %p470 = pneg %p111
        %p471 = pneg %p135
        %p472 = pneg %p132
        %p473 = pneg %p156
        %p474 = pneg %p153
        %s475 = sand.u32 %s30, 1
        %s476 = scalar_lea.sflag [#allocation3], %s475
        %s477 = sand.u32 %s169, 1
        %s478 = smul.addr %s477, 32
        %s479 = scalar_lea.vmem [#allocation10], %s478
        %p480 = pneg %p182
        %p481 = pneg %p179
        %p482 = pneg %p203
        %p483 = pneg %p200
        %p484 = pneg %p224
        %p485 = pneg %p221
        %p486 = pneg %p245
        %p487 = pneg %p242
        %p488 = pneg %p266
        %p489 = pneg %p263
        %p490 = pneg %p292
        %p491 = pneg %p289
        %s492 = sand.u32 %s279, 1
        %s493 = scalar_lea.sflag [#allocation4], %s492
        %s494 = sand.u32 %s279, 1
        %s495 = smul.addr %s494, 8
        %s496 = scalar_lea.vmem [#allocation12], %s495
        %v497 = vld [vmem:[%s428] sm:$0xff]
        %v498 = vld [vmem:[#allocation5] sm:$0xff]
        %v499 = vld [vmem:[#allocation5 + $0x8] sm:$0xff]
        %v500 = vld [vmem:[#allocation5 + $0x10] sm:$0xff]
        %v501 = vld [vmem:[#allocation5 + $0x18] sm:$0xff]
        %v502 = vld [vmem:[%s4] sm:$0x1]
        %v504 = vlaneseq
        %v505 = vshrl.u32 %v504, 7
        %v506 = vsub.s32 0, %v505
        %v507 = vrot.slane %v502, %v506
        %vm509 = vcmask 261120
        %v511 = vsel %vm509, %v497, 0
        %513 = vmatprep.subr.mxu0 0.0
        %514 = vmatpush1.msra.mxu0 %v498
        %515 = vmatprep.subr.mxu0 0.0
        %516 = vmatpush1.msra.mxu0 %v499
        %517 = vmatprep.subr.mxu0 0.0
        %518 = vmatpush1.msra.mxu0 %v500
        %519 = vmatprep.subr.mxu0 0.0
        %520 = vmatpush1.msra.mxu0 %v501
        %521 = vmatprep.subr.mxu0 0.0
        %522 = vmatpush1.msra.mxu0 0.0
        %523 = vmatprep.subr.mxu0 0.0
        %524 = vmatpush1.msra.mxu0 0.0
        %525 = vmatprep.subr.mxu0 0.0
        %526 = vmatpush1.msra.mxu0 0.0
        %527 = vmatprep.subr.mxu0 0.0
        %528 = vmatpush1.msra.mxu0 0.0
        %529 = vmatprep.subr.mxu0 0.0
        %530 = vmatpush1.msra.mxu0 0.0
        %531 = vmatprep.subr.mxu0 0.0
        %532 = vmatpush1.msra.mxu0 0.0
        %533 = vmatprep.subr.mxu0 0.0
        %534 = vmatpush1.msra.mxu0 0.0
        %535 = vmatprep.subr.mxu0 0.0
        %536 = vmatpush1.msra.mxu0 0.0
        %537 = vmatprep.subr.mxu0 0.0
        %538 = vmatpush1.msra.mxu0 0.0
        %539 = vmatprep.subr.mxu0 0.0
        %540 = vmatpush1.msra.mxu0 0.0
        %541 = vmatprep.subr.mxu0 0.0
        %542 = vmatpush1.msra.mxu0 0.0
        %543 = vmatprep.subr.mxu0 0.0
        %544 = vmatpush1.msra.mxu0 0.0
        %545 = vmatprep.subr.mxu0 0.0
        %546 = vmatpush1.msra.mxu0 0.0
        %547 = vmatprep.subr.mxu0 0.0
        %548 = vmatpush1.msra.mxu0 0.0
        %549 = vmatprep.subr.mxu0 0.0
        %550 = vmatpush1.msra.mxu0 0.0
        %551 = vmatprep.subr.mxu0 0.0
        %552 = vmatpush1.msra.mxu0 0.0
        %553 = vmatprep.subr.mxu0 0.0
        %554 = vmatpush1.msra.mxu0 0.0
        %555 = vmatprep.subr.mxu0 0.0
        %556 = vmatpush1.msra.mxu0 0.0
        %557 = vmatprep.subr.mxu0 0.0
        %558 = vmatpush1.msra.mxu0 0.0
        %559 = vmatprep.subr.mxu0 0.0
        %560 = vmatpush1.msra.mxu0 0.0
        %561 = vmatprep.subr.mxu0 0.0
        %562 = vmatpush1.msra.mxu0 0.0
        %563 = vmatprep.subr.mxu0 0.0
        %564 = vmatpush1.msra.mxu0 0.0
        %565 = vmatprep.subr.mxu0 0.0
        %566 = vmatpush1.msra.mxu0 0.0
        %567 = vmatprep.subr.mxu0 0.0
        %568 = vmatpush1.msra.mxu0 0.0
        %569 = vmatprep.subr.mxu0 0.0
        %570 = vmatpush1.msra.mxu0 0.0
        %571 = vmatprep.subr.mxu0 0.0
        %572 = vmatpush1.msra.mxu0 0.0
        %573 = vmatprep.subr.mxu0 0.0
        %574 = vmatpush1.msra.mxu0 0.0
        %575 = vmatprep.subr.mxu0 0.0
        %576 = vmatpush1.msra.mxu0 0.0
        %577 = vmatprep.mubr.f32.mxu0 0.0
        %578 = vmatmul.mubr.f32.gmra.mrb[0].mxu0 %v511
        %v579 = vpop.f32.mrb[0].mxu0
        %v580 = vadd.f32 %v507, %v579
        %v581 = vpop.f32.mrb[0].mxu0
        %582 = vdwg.mxu0
        %v583 = vld [vmem:[#allocation7] sm:$0xff]
        %v584 = vld [vmem:[#allocation7 + $0x8] sm:$0xff]
        %v585 = vld [vmem:[#allocation7 + $0x10] sm:$0xff]
        %v586 = vld [vmem:[#allocation7 + $0x18] sm:$0xff]
        %587 = vmatprep.subr.mxu0 0.0
        %588 = vmatpush1.msra.mxu0 %v583
        %589 = vmatprep.subr.mxu0 0.0
        %590 = vmatpush1.msra.mxu0 %v584
        %591 = vmatprep.subr.mxu0 0.0
        %592 = vmatpush1.msra.mxu0 %v585
        %593 = vmatprep.subr.mxu0 0.0
        %594 = vmatpush1.msra.mxu0 %v586
        %595 = vmatprep.subr.mxu0 0.0
        %596 = vmatpush1.msra.mxu0 0.0
        %597 = vmatprep.subr.mxu0 0.0
        %598 = vmatpush1.msra.mxu0 0.0
        %599 = vmatprep.subr.mxu0 0.0
        %600 = vmatpush1.msra.mxu0 0.0
        %601 = vmatprep.subr.mxu0 0.0
        %602 = vmatpush1.msra.mxu0 0.0
        %603 = vmatprep.subr.mxu0 0.0
        %604 = vmatpush1.msra.mxu0 0.0
        %605 = vmatprep.subr.mxu0 0.0
        %606 = vmatpush1.msra.mxu0 0.0
        %607 = vmatprep.subr.mxu0 0.0
        %608 = vmatpush1.msra.mxu0 0.0
        %609 = vmatprep.subr.mxu0 0.0
        %610 = vmatpush1.msra.mxu0 0.0
        %611 = vmatprep.subr.mxu0 0.0
        %612 = vmatpush1.msra.mxu0 0.0
        %613 = vmatprep.subr.mxu0 0.0
        %614 = vmatpush1.msra.mxu0 0.0
        %615 = vmatprep.subr.mxu0 0.0
        %616 = vmatpush1.msra.mxu0 0.0
        %617 = vmatprep.subr.mxu0 0.0
        %618 = vmatpush1.msra.mxu0 0.0
        %619 = vmatprep.subr.mxu0 0.0
        %620 = vmatpush1.msra.mxu0 0.0
        %621 = vmatprep.subr.mxu0 0.0
        %622 = vmatpush1.msra.mxu0 0.0
        %623 = vmatprep.subr.mxu0 0.0
        %624 = vmatpush1.msra.mxu0 0.0
        %625 = vmatprep.subr.mxu0 0.0
        %626 = vmatpush1.msra.mxu0 0.0
        %627 = vmatprep.subr.mxu0 0.0
        %628 = vmatpush1.msra.mxu0 0.0
        %629 = vmatprep.subr.mxu0 0.0
        %630 = vmatpush1.msra.mxu0 0.0
        %631 = vmatprep.subr.mxu0 0.0
        %632 = vmatpush1.msra.mxu0 0.0
        %633 = vmatprep.subr.mxu0 0.0
        %634 = vmatpush1.msra.mxu0 0.0
        %635 = vmatprep.subr.mxu0 0.0
        %636 = vmatpush1.msra.mxu0 0.0
        %637 = vmatprep.subr.mxu0 0.0
        %638 = vmatpush1.msra.mxu0 0.0
        %639 = vmatprep.subr.mxu0 0.0
        %640 = vmatpush1.msra.mxu0 0.0
        %641 = vmatprep.subr.mxu0 0.0
        %642 = vmatpush1.msra.mxu0 0.0
        %643 = vmatprep.subr.mxu0 0.0
        %644 = vmatpush1.msra.mxu0 0.0
        %645 = vmatprep.subr.mxu0 0.0
        %646 = vmatpush1.msra.mxu0 0.0
        %647 = vmatprep.subr.mxu0 0.0
        %648 = vmatpush1.msra.mxu0 0.0
        %649 = vmatprep.subr.mxu0 0.0
        %650 = vmatpush1.msra.mxu0 0.0
        %651 = vmatprep.mubr.f32.mxu0 0.0
        %652 = vmatmul.mubr.f32.gmra.mrb[0].mxu0 %v511
        %v653 = vpop.f32.mrb[0].mxu0
        %v654 = vadd.f32 0.0, %v653
        %v655 = vpop.f32.mrb[0].mxu0
        %656 = vdwg.mxu0
        %v657 = vld [vmem:[#allocation8] sm:$0xff]
        %v658 = vld [vmem:[#allocation8 + $0x8] sm:$0xff]
        %v659 = vld [vmem:[#allocation8 + $0x10] sm:$0xff]
        %v660 = vld [vmem:[#allocation8 + $0x18] sm:$0xff]
        %v661 = vld [vmem:[%s5] sm:$0x1]
        %v663 = vlaneseq
        %v664 = vshrl.u32 %v663, 7
        %v665 = vsub.s32 0, %v664
        %v666 = vrot.slane %v661, %v665
        %668 = vmatprep.subr.mxu0 0.0
        %669 = vmatpush1.msra.mxu0 %v657
        %670 = vmatprep.subr.mxu0 0.0
        %671 = vmatpush1.msra.mxu0 %v658
        %672 = vmatprep.subr.mxu0 0.0
        %673 = vmatpush1.msra.mxu0 %v659
        %674 = vmatprep.subr.mxu0 0.0
        %675 = vmatpush1.msra.mxu0 %v660
        %676 = vmatprep.subr.mxu0 0.0
        %677 = vmatpush1.msra.mxu0 0.0
        %678 = vmatprep.subr.mxu0 0.0
        %679 = vmatpush1.msra.mxu0 0.0
        %680 = vmatprep.subr.mxu0 0.0
        %681 = vmatpush1.msra.mxu0 0.0
        %682 = vmatprep.subr.mxu0 0.0
        %683 = vmatpush1.msra.mxu0 0.0
        %684 = vmatprep.subr.mxu0 0.0
        %685 = vmatpush1.msra.mxu0 0.0
        %686 = vmatprep.subr.mxu0 0.0
        %687 = vmatpush1.msra.mxu0 0.0
        %688 = vmatprep.subr.mxu0 0.0
        %689 = vmatpush1.msra.mxu0 0.0
        %690 = vmatprep.subr.mxu0 0.0
        %691 = vmatpush1.msra.mxu0 0.0
        %692 = vmatprep.subr.mxu0 0.0
        %693 = vmatpush1.msra.mxu0 0.0
        %694 = vmatprep.subr.mxu0 0.0
        %695 = vmatpush1.msra.mxu0 0.0
        %696 = vmatprep.subr.mxu0 0.0
        %697 = vmatpush1.msra.mxu0 0.0
        %698 = vmatprep.subr.mxu0 0.0
        %699 = vmatpush1.msra.mxu0 0.0
        %700 = vmatprep.subr.mxu0 0.0
        %701 = vmatpush1.msra.mxu0 0.0
        %702 = vmatprep.subr.mxu0 0.0
        %703 = vmatpush1.msra.mxu0 0.0
        %704 = vmatprep.subr.mxu0 0.0
        %705 = vmatpush1.msra.mxu0 0.0
        %706 = vmatprep.subr.mxu0 0.0
        %707 = vmatpush1.msra.mxu0 0.0
        %708 = vmatprep.subr.mxu0 0.0
        %709 = vmatpush1.msra.mxu0 0.0
        %710 = vmatprep.subr.mxu0 0.0
        %711 = vmatpush1.msra.mxu0 0.0
        %712 = vmatprep.subr.mxu0 0.0
        %713 = vmatpush1.msra.mxu0 0.0
        %714 = vmatprep.subr.mxu0 0.0
        %715 = vmatpush1.msra.mxu0 0.0
        %716 = vmatprep.subr.mxu0 0.0
        %717 = vmatpush1.msra.mxu0 0.0
        %718 = vmatprep.subr.mxu0 0.0
        %719 = vmatpush1.msra.mxu0 0.0
        %720 = vmatprep.subr.mxu0 0.0
        %721 = vmatpush1.msra.mxu0 0.0
        %722 = vmatprep.subr.mxu0 0.0
        %723 = vmatpush1.msra.mxu0 0.0
        %724 = vmatprep.subr.mxu0 0.0
        %725 = vmatpush1.msra.mxu0 0.0
        %726 = vmatprep.subr.mxu0 0.0
        %727 = vmatpush1.msra.mxu0 0.0
        %728 = vmatprep.subr.mxu0 0.0
        %729 = vmatpush1.msra.mxu0 0.0
        %730 = vmatprep.subr.mxu0 0.0
        %731 = vmatpush1.msra.mxu0 0.0
        %732 = vmatprep.mubr.f32.mxu0 0.0
        %733 = vmatmul.mubr.f32.gmra.mrb[0].mxu0 %v511
        %v734 = vpop.f32.mrb[0].mxu0
        %v735 = vadd.f32 %v666, %v734
        %v736 = vpop.f32.mrb[0].mxu0
        %737 = vdwg.mxu0
        %v738 = vld [vmem:[%s449] sm:$0xff]
        %vm739 = vcmask 64512
        %v741 = vsel %vm739, %v580, 0
        %v744 = vsel %vm739, %v654, 0
        %746 = vmatprep.subr.mxu0 0.0
        %747 = vmatpush1.xpose.msra.mxu0 %v744
        %748 = vmatprep.subr.mxu0 0.0
        %749 = vmatpush1.xpose.msra.mxu0 0.0
        %750 = vmatprep.subr.mxu0 0.0
        %751 = vmatpush1.xpose.msra.mxu0 0.0
        %752 = vmatprep.subr.mxu0 0.0
        %753 = vmatpush1.xpose.msra.mxu0 0.0
        %754 = vmatprep.subr.mxu0 0.0
        %755 = vmatpush1.xpose.msra.mxu0 0.0
        %756 = vmatprep.subr.mxu0 0.0
        %757 = vmatpush1.xpose.msra.mxu0 0.0
        %758 = vmatprep.subr.mxu0 0.0
        %759 = vmatpush1.xpose.msra.mxu0 0.0
        %760 = vmatprep.subr.mxu0 0.0
        %761 = vmatpush1.xpose.msra.mxu0 0.0
        %762 = vmatprep.subr.mxu0 0.0
        %763 = vmatpush1.xpose.msra.mxu0 0.0
        %764 = vmatprep.subr.mxu0 0.0
        %765 = vmatpush1.xpose.msra.mxu0 0.0
        %766 = vmatprep.subr.mxu0 0.0
        %767 = vmatpush1.xpose.msra.mxu0 0.0
        %768 = vmatprep.subr.mxu0 0.0
        %769 = vmatpush1.xpose.msra.mxu0 0.0
        %770 = vmatprep.subr.mxu0 0.0
        %771 = vmatpush1.xpose.msra.mxu0 0.0
        %772 = vmatprep.subr.mxu0 0.0
        %773 = vmatpush1.xpose.msra.mxu0 0.0
        %774 = vmatprep.subr.mxu0 0.0
        %775 = vmatpush1.xpose.msra.mxu0 0.0
        %776 = vmatprep.subr.mxu0 0.0
        %777 = vmatpush1.xpose.msra.mxu0 0.0
        %778 = vmatprep.subr.mxu0 0.0
        %779 = vmatpush1.xpose.msra.mxu0 0.0
        %780 = vmatprep.subr.mxu0 0.0
        %781 = vmatpush1.xpose.msra.mxu0 0.0
        %782 = vmatprep.subr.mxu0 0.0
        %783 = vmatpush1.xpose.msra.mxu0 0.0
        %784 = vmatprep.subr.mxu0 0.0
        %785 = vmatpush1.xpose.msra.mxu0 0.0
        %786 = vmatprep.subr.mxu0 0.0
        %787 = vmatpush1.xpose.msra.mxu0 0.0
        %788 = vmatprep.subr.mxu0 0.0
        %789 = vmatpush1.xpose.msra.mxu0 0.0
        %790 = vmatprep.subr.mxu0 0.0
        %791 = vmatpush1.xpose.msra.mxu0 0.0
        %792 = vmatprep.subr.mxu0 0.0
        %793 = vmatpush1.xpose.msra.mxu0 0.0
        %794 = vmatprep.subr.mxu0 0.0
        %795 = vmatpush1.xpose.msra.mxu0 0.0
        %796 = vmatprep.subr.mxu0 0.0
        %797 = vmatpush1.xpose.msra.mxu0 0.0
        %798 = vmatprep.subr.mxu0 0.0
        %799 = vmatpush1.xpose.msra.mxu0 0.0
        %800 = vmatprep.subr.mxu0 0.0
        %801 = vmatpush1.xpose.msra.mxu0 0.0
        %802 = vmatprep.subr.mxu0 0.0
        %803 = vmatpush1.xpose.msra.mxu0 0.0
        %804 = vmatprep.subr.mxu0 0.0
        %805 = vmatpush1.xpose.msra.mxu0 0.0
        %806 = vmatprep.subr.mxu0 0.0
        %807 = vmatpush1.xpose.msra.mxu0 0.0
        %808 = vmatprep.subr.mxu0 0.0
        %809 = vmatpush1.xpose.msra.mxu0 0.0
        %810 = vmatprep.mubr.f32.mxu0 0.0
        %811 = vmatmul.mubr.f32.gmra.mrb[0].mxu0 %v741
        %v812 = vpop.f32.mrb[0].mxu0
        %v813 = vadd.f32 %v738, %v812
        %v814 = vpop.f32.mrb[0].mxu0
        %815 = vdwg.mxu0
        %v816 = vsel %vm739, %v813, -inf
        %817 = vmax.xlane.f32.xlu0 %v816
        %v818 = vpop.xlane.xlu0 %817
        %v819 = vsub.f32 %v813, %v818
        %v820 = vmul.f32 %v819, 1.442695
        %v821 = vpow.pop %v820
        %v822 = vsel %vm739, %v821, 0.0
        %823 = vadd.xlane.f32.xlu0 %v822
        %v824 = vpop.xlane.xlu0 %823
        %v825 = vrcp.pop %v824
        %v826 = vmul.f32 %v821, %v825
        %v828 = vsel %vm739, %v826, 0
        %830 = vmatprep.subr.mxu0 0.0
        %831 = vmatpush1.msra.mxu0 %v735
        %832 = vmatprep.subr.mxu0 0.0
        %833 = vmatpush1.msra.mxu0 0.0
        %834 = vmatprep.subr.mxu0 0.0
        %835 = vmatpush1.msra.mxu0 0.0
        %836 = vmatprep.subr.mxu0 0.0
        %837 = vmatpush1.msra.mxu0 0.0
        %838 = vmatprep.subr.mxu0 0.0
        %839 = vmatpush1.msra.mxu0 0.0
        %840 = vmatprep.subr.mxu0 0.0
        %841 = vmatpush1.msra.mxu0 0.0
        %842 = vmatprep.subr.mxu0 0.0
        %843 = vmatpush1.msra.mxu0 0.0
        %844 = vmatprep.subr.mxu0 0.0
        %845 = vmatpush1.msra.mxu0 0.0
        %846 = vmatprep.subr.mxu0 0.0
        %847 = vmatpush1.msra.mxu0 0.0
        %848 = vmatprep.subr.mxu0 0.0
        %849 = vmatpush1.msra.mxu0 0.0
        %850 = vmatprep.subr.mxu0 0.0
        %851 = vmatpush1.msra.mxu0 0.0
        %852 = vmatprep.subr.mxu0 0.0
        %853 = vmatpush1.msra.mxu0 0.0
        %854 = vmatprep.subr.mxu0 0.0
        %855 = vmatpush1.msra.mxu0 0.0
        %856 = vmatprep.subr.mxu0 0.0
        %857 = vmatpush1.msra.mxu0 0.0
        %858 = vmatprep.subr.mxu0 0.0
        %859 = vmatpush1.msra.mxu0 0.0
        %860 = vmatprep.subr.mxu0 0.0
        %861 = vmatpush1.msra.mxu0 0.0
        %862 = vmatprep.subr.mxu0 0.0
        %863 = vmatpush1.msra.mxu0 0.0
        %864 = vmatprep.subr.mxu0 0.0
        %865 = vmatpush1.msra.mxu0 0.0
        %866 = vmatprep.subr.mxu0 0.0
        %867 = vmatpush1.msra.mxu0 0.0
        %868 = vmatprep.subr.mxu0 0.0
        %869 = vmatpush1.msra.mxu0 0.0
        %870 = vmatprep.subr.mxu0 0.0
        %871 = vmatpush1.msra.mxu0 0.0
        %872 = vmatprep.subr.mxu0 0.0
        %873 = vmatpush1.msra.mxu0 0.0
        %874 = vmatprep.subr.mxu0 0.0
        %875 = vmatpush1.msra.mxu0 0.0
        %876 = vmatprep.subr.mxu0 0.0
        %877 = vmatpush1.msra.mxu0 0.0
        %878 = vmatprep.subr.mxu0 0.0
        %879 = vmatpush1.msra.mxu0 0.0
        %880 = vmatprep.subr.mxu0 0.0
        %881 = vmatpush1.msra.mxu0 0.0
        %882 = vmatprep.subr.mxu0 0.0
        %883 = vmatpush1.msra.mxu0 0.0
        %884 = vmatprep.subr.mxu0 0.0
        %885 = vmatpush1.msra.mxu0 0.0
        %886 = vmatprep.subr.mxu0 0.0
        %887 = vmatpush1.msra.mxu0 0.0
        %888 = vmatprep.subr.mxu0 0.0
        %889 = vmatpush1.msra.mxu0 0.0
        %890 = vmatprep.subr.mxu0 0.0
        %891 = vmatpush1.msra.mxu0 0.0
        %892 = vmatprep.subr.mxu0 0.0
        %893 = vmatpush1.msra.mxu0 0.0
        %894 = vmatprep.mubr.f32.mxu0 0.0
        %895 = vmatmul.mubr.f32.gmra.mrb[0].mxu0 %v828
        %v896 = vpop.f32.mrb[0].mxu0
        %v897 = vadd.f32 0.0, %v896
        %v898 = vpop.f32.mrb[0].mxu0
        %899 = vdwg.mxu0
        %s900 = scalar_lea.vmem %s449, 8 [#allocation10]
        %v901 = vld [vmem:[%s900] sm:$0xff]
        %902 = vrot.lane.b32.xlu0 %v580, 120
        %v903 = vpop.permute.xlu0 %902
        %904 = vrot.lane.b32.xlu0 %v654, 120
        %v905 = vpop.permute.xlu0 %904
        %v906 = vsel %vm739, %v903, 0
        %v908 = vsel %vm739, %v905, 0
        %910 = vmatprep.subr.mxu0 0.0
        %911 = vmatpush1.xpose.msra.mxu0 %v908
        %912 = vmatprep.subr.mxu0 0.0
        %913 = vmatpush1.xpose.msra.mxu0 0.0
        %914 = vmatprep.subr.mxu0 0.0
        %915 = vmatpush1.xpose.msra.mxu0 0.0
        %916 = vmatprep.subr.mxu0 0.0
        %917 = vmatpush1.xpose.msra.mxu0 0.0
        %918 = vmatprep.subr.mxu0 0.0
        %919 = vmatpush1.xpose.msra.mxu0 0.0
        %920 = vmatprep.subr.mxu0 0.0
        %921 = vmatpush1.xpose.msra.mxu0 0.0
        %922 = vmatprep.subr.mxu0 0.0
        %923 = vmatpush1.xpose.msra.mxu0 0.0
        %924 = vmatprep.subr.mxu0 0.0
        %925 = vmatpush1.xpose.msra.mxu0 0.0
        %926 = vmatprep.subr.mxu0 0.0
        %927 = vmatpush1.xpose.msra.mxu0 0.0
        %928 = vmatprep.subr.mxu0 0.0
        %929 = vmatpush1.xpose.msra.mxu0 0.0
        %930 = vmatprep.subr.mxu0 0.0
        %931 = vmatpush1.xpose.msra.mxu0 0.0
        %932 = vmatprep.subr.mxu0 0.0
        %933 = vmatpush1.xpose.msra.mxu0 0.0
        %934 = vmatprep.subr.mxu0 0.0
        %935 = vmatpush1.xpose.msra.mxu0 0.0
        %936 = vmatprep.subr.mxu0 0.0
        %937 = vmatpush1.xpose.msra.mxu0 0.0
        %938 = vmatprep.subr.mxu0 0.0
        %939 = vmatpush1.xpose.msra.mxu0 0.0
        %940 = vmatprep.subr.mxu0 0.0
        %941 = vmatpush1.xpose.msra.mxu0 0.0
        %942 = vmatprep.subr.mxu0 0.0
        %943 = vmatpush1.xpose.msra.mxu0 0.0
        %944 = vmatprep.subr.mxu0 0.0
        %945 = vmatpush1.xpose.msra.mxu0 0.0
        %946 = vmatprep.subr.mxu0 0.0
        %947 = vmatpush1.xpose.msra.mxu0 0.0
        %948 = vmatprep.subr.mxu0 0.0
        %949 = vmatpush1.xpose.msra.mxu0 0.0
        %950 = vmatprep.subr.mxu0 0.0
        %951 = vmatpush1.xpose.msra.mxu0 0.0
        %952 = vmatprep.subr.mxu0 0.0
        %953 = vmatpush1.xpose.msra.mxu0 0.0
        %954 = vmatprep.subr.mxu0 0.0
        %955 = vmatpush1.xpose.msra.mxu0 0.0
        %956 = vmatprep.subr.mxu0 0.0
        %957 = vmatpush1.xpose.msra.mxu0 0.0
        %958 = vmatprep.subr.mxu0 0.0
        %959 = vmatpush1.xpose.msra.mxu0 0.0
        %960 = vmatprep.subr.mxu0 0.0
        %961 = vmatpush1.xpose.msra.mxu0 0.0
        %962 = vmatprep.subr.mxu0 0.0
        %963 = vmatpush1.xpose.msra.mxu0 0.0
        %964 = vmatprep.subr.mxu0 0.0
        %965 = vmatpush1.xpose.msra.mxu0 0.0
        %966 = vmatprep.subr.mxu0 0.0
        %967 = vmatpush1.xpose.msra.mxu0 0.0
        %968 = vmatprep.subr.mxu0 0.0
        %969 = vmatpush1.xpose.msra.mxu0 0.0
        %970 = vmatprep.subr.mxu0 0.0
        %971 = vmatpush1.xpose.msra.mxu0 0.0
        %972 = vmatprep.subr.mxu0 0.0
        %973 = vmatpush1.xpose.msra.mxu0 0.0
        %974 = vmatprep.mubr.f32.mxu0 0.0
        %975 = vmatmul.mubr.f32.gmra.mrb[0].mxu0 %v906
        %v976 = vpop.f32.mrb[0].mxu0
        %v977 = vadd.f32 %v901, %v976
        %v978 = vpop.f32.mrb[0].mxu0
        %979 = vdwg.mxu0
        %v980 = vsel %vm739, %v977, -inf
        %981 = vmax.xlane.f32.xlu0 %v980
        %v982 = vpop.xlane.xlu0 %981
        %v983 = vsub.f32 %v977, %v982
        %v984 = vmul.f32 %v983, 1.442695
        %v985 = vpow.pop %v984
        %v986 = vsel %vm739, %v985, 0.0
        %987 = vadd.xlane.f32.xlu0 %v986
        %v988 = vpop.xlane.xlu0 %987
        %v989 = vrcp.pop %v988
        %v990 = vmul.f32 %v985, %v989
        %992 = vrot.lane.b32.xlu0 %v735, 120
        %v993 = vpop.permute.xlu0 %992
        %v996 = vsel %vm739, %v990, 0
        %998 = vmatprep.subr.mxu0 0.0
        %999 = vmatpush1.msra.mxu0 %v993
        %1000 = vmatprep.subr.mxu0 0.0
        %1001 = vmatpush1.msra.mxu0 0.0
        %1002 = vmatprep.subr.mxu0 0.0
        %1003 = vmatpush1.msra.mxu0 0.0
        %1004 = vmatprep.subr.mxu0 0.0
        %1005 = vmatpush1.msra.mxu0 0.0
        %1006 = vmatprep.subr.mxu0 0.0
        %1007 = vmatpush1.msra.mxu0 0.0
        %1008 = vmatprep.subr.mxu0 0.0
        %1009 = vmatpush1.msra.mxu0 0.0
        %1010 = vmatprep.subr.mxu0 0.0
        %1011 = vmatpush1.msra.mxu0 0.0
        %1012 = vmatprep.subr.mxu0 0.0
        %1013 = vmatpush1.msra.mxu0 0.0
        %1014 = vmatprep.subr.mxu0 0.0
        %1015 = vmatpush1.msra.mxu0 0.0
        %1016 = vmatprep.subr.mxu0 0.0
        %1017 = vmatpush1.msra.mxu0 0.0
        %1018 = vmatprep.subr.mxu0 0.0
        %1019 = vmatpush1.msra.mxu0 0.0
        %1020 = vmatprep.subr.mxu0 0.0
        %1021 = vmatpush1.msra.mxu0 0.0
        %1022 = vmatprep.subr.mxu0 0.0
        %1023 = vmatpush1.msra.mxu0 0.0
        %1024 = vmatprep.subr.mxu0 0.0
        %1025 = vmatpush1.msra.mxu0 0.0
        %1026 = vmatprep.subr.mxu0 0.0
        %1027 = vmatpush1.msra.mxu0 0.0
        %1028 = vmatprep.subr.mxu0 0.0
        %1029 = vmatpush1.msra.mxu0 0.0
        %1030 = vmatprep.subr.mxu0 0.0
        %1031 = vmatpush1.msra.mxu0 0.0
        %1032 = vmatprep.subr.mxu0 0.0
        %1033 = vmatpush1.msra.mxu0 0.0
        %1034 = vmatprep.subr.mxu0 0.0
        %1035 = vmatpush1.msra.mxu0 0.0
        %1036 = vmatprep.subr.mxu0 0.0
        %1037 = vmatpush1.msra.mxu0 0.0
        %1038 = vmatprep.subr.mxu0 0.0
        %1039 = vmatpush1.msra.mxu0 0.0
        %1040 = vmatprep.subr.mxu0 0.0
        %1041 = vmatpush1.msra.mxu0 0.0
        %1042 = vmatprep.subr.mxu0 0.0
        %1043 = vmatpush1.msra.mxu0 0.0
        %1044 = vmatprep.subr.mxu0 0.0
        %1045 = vmatpush1.msra.mxu0 0.0
        %1046 = vmatprep.subr.mxu0 0.0
        %1047 = vmatpush1.msra.mxu0 0.0
        %1048 = vmatprep.subr.mxu0 0.0
        %1049 = vmatpush1.msra.mxu0 0.0
        %1050 = vmatprep.subr.mxu0 0.0
        %1051 = vmatpush1.msra.mxu0 0.0
        %1052 = vmatprep.subr.mxu0 0.0
        %1053 = vmatpush1.msra.mxu0 0.0
        %1054 = vmatprep.subr.mxu0 0.0
        %1055 = vmatpush1.msra.mxu0 0.0
        %1056 = vmatprep.subr.mxu0 0.0
        %1057 = vmatpush1.msra.mxu0 0.0
        %1058 = vmatprep.subr.mxu0 0.0
        %1059 = vmatpush1.msra.mxu0 0.0
        %1060 = vmatprep.subr.mxu0 0.0
        %1061 = vmatpush1.msra.mxu0 0.0
        %1062 = vmatprep.mubr.f32.mxu0 0.0
        %1063 = vmatmul.mubr.f32.gmra.mrb[0].mxu0 %v996
        %v1064 = vpop.f32.mrb[0].mxu0
        %v1065 = vadd.f32 0.0, %v1064
        %v1066 = vpop.f32.mrb[0].mxu0
        %1067 = vdwg.mxu0
        %s1068 = scalar_lea.vmem %s449, 16 [#allocation10]
        %v1069 = vld [vmem:[%s1068] sm:$0xff]
        %1070 = vrot.lane.b32.xlu0 %v580, 112
        %v1071 = vpop.permute.xlu0 %1070
        %1072 = vrot.lane.b32.xlu0 %v654, 112
        %v1073 = vpop.permute.xlu0 %1072
        %v1074 = vsel %vm739, %v1071, 0
        %v1076 = vsel %vm739, %v1073, 0
        %1078 = vmatprep.subr.mxu0 0.0
        %1079 = vmatpush1.xpose.msra.mxu0 %v1076
        %1080 = vmatprep.subr.mxu0 0.0
        %1081 = vmatpush1.xpose.msra.mxu0 0.0
        %1082 = vmatprep.subr.mxu0 0.0
        %1083 = vmatpush1.xpose.msra.mxu0 0.0
        %1084 = vmatprep.subr.mxu0 0.0
        %1085 = vmatpush1.xpose.msra.mxu0 0.0
        %1086 = vmatprep.subr.mxu0 0.0
        %1087 = vmatpush1.xpose.msra.mxu0 0.0
        %1088 = vmatprep.subr.mxu0 0.0
        %1089 = vmatpush1.xpose.msra.mxu0 0.0
        %1090 = vmatprep.subr.mxu0 0.0
        %1091 = vmatpush1.xpose.msra.mxu0 0.0
        %1092 = vmatprep.subr.mxu0 0.0
        %1093 = vmatpush1.xpose.msra.mxu0 0.0
        %1094 = vmatprep.subr.mxu0 0.0
        %1095 = vmatpush1.xpose.msra.mxu0 0.0
        %1096 = vmatprep.subr.mxu0 0.0
        %1097 = vmatpush1.xpose.msra.mxu0 0.0
        %1098 = vmatprep.subr.mxu0 0.0
        %1099 = vmatpush1.xpose.msra.mxu0 0.0
        %1100 = vmatprep.subr.mxu0 0.0
        %1101 = vmatpush1.xpose.msra.mxu0 0.0
        %1102 = vmatprep.subr.mxu0 0.0
        %1103 = vmatpush1.xpose.msra.mxu0 0.0
        %1104 = vmatprep.subr.mxu0 0.0
        %1105 = vmatpush1.xpose.msra.mxu0 0.0
        %1106 = vmatprep.subr.mxu0 0.0
        %1107 = vmatpush1.xpose.msra.mxu0 0.0
        %1108 = vmatprep.subr.mxu0 0.0
        %1109 = vmatpush1.xpose.msra.mxu0 0.0
        %1110 = vmatprep.subr.mxu0 0.0
        %1111 = vmatpush1.xpose.msra.mxu0 0.0
        %1112 = vmatprep.subr.mxu0 0.0
        %1113 = vmatpush1.xpose.msra.mxu0 0.0
        %1114 = vmatprep.subr.mxu0 0.0
        %1115 = vmatpush1.xpose.msra.mxu0 0.0
        %1116 = vmatprep.subr.mxu0 0.0
        %1117 = vmatpush1.xpose.msra.mxu0 0.0
        %1118 = vmatprep.subr.mxu0 0.0
        %1119 = vmatpush1.xpose.msra.mxu0 0.0
        %1120 = vmatprep.subr.mxu0 0.0
        %1121 = vmatpush1.xpose.msra.mxu0 0.0
        %1122 = vmatprep.subr.mxu0 0.0
        %1123 = vmatpush1.xpose.msra.mxu0 0.0
        %1124 = vmatprep.subr.mxu0 0.0
        %1125 = vmatpush1.xpose.msra.mxu0 0.0
        %1126 = vmatprep.subr.mxu0 0.0
        %1127 = vmatpush1.xpose.msra.mxu0 0.0
        %1128 = vmatprep.subr.mxu0 0.0
        %1129 = vmatpush1.xpose.msra.mxu0 0.0
        %1130 = vmatprep.subr.mxu0 0.0
        %1131 = vmatpush1.xpose.msra.mxu0 0.0
        %1132 = vmatprep.subr.mxu0 0.0
        %1133 = vmatpush1.xpose.msra.mxu0 0.0
        %1134 = vmatprep.subr.mxu0 0.0
        %1135 = vmatpush1.xpose.msra.mxu0 0.0
        %1136 = vmatprep.subr.mxu0 0.0
        %1137 = vmatpush1.xpose.msra.mxu0 0.0
        %1138 = vmatprep.subr.mxu0 0.0
        %1139 = vmatpush1.xpose.msra.mxu0 0.0
        %1140 = vmatprep.subr.mxu0 0.0
        %1141 = vmatpush1.xpose.msra.mxu0 0.0
        %1142 = vmatprep.mubr.f32.mxu0 0.0
        %1143 = vmatmul.mubr.f32.gmra.mrb[0].mxu0 %v1074
        %v1144 = vpop.f32.mrb[0].mxu0
        %v1145 = vadd.f32 %v1069, %v1144
        %v1146 = vpop.f32.mrb[0].mxu0
        %1147 = vdwg.mxu0
        %v1148 = vsel %vm739, %v1145, -inf
        %1149 = vmax.xlane.f32.xlu0 %v1148
        %v1150 = vpop.xlane.xlu0 %1149
        %v1151 = vsub.f32 %v1145, %v1150
        %v1152 = vmul.f32 %v1151, 1.442695
        %v1153 = vpow.pop %v1152
        %v1154 = vsel %vm739, %v1153, 0.0
        %1155 = vadd.xlane.f32.xlu0 %v1154
        %v1156 = vpop.xlane.xlu0 %1155
        %v1157 = vrcp.pop %v1156
        %v1158 = vmul.f32 %v1153, %v1157
        %1159 = vrot.lane.b32.xlu0 %v735, 112
        %v1160 = vpop.permute.xlu0 %1159
        %v1163 = vsel %vm739, %v1158, 0
        %1165 = vmatprep.subr.mxu0 0.0
        %1166 = vmatpush1.msra.mxu0 %v1160
        %1167 = vmatprep.subr.mxu0 0.0
        %1168 = vmatpush1.msra.mxu0 0.0
        %1169 = vmatprep.subr.mxu0 0.0
        %1170 = vmatpush1.msra.mxu0 0.0
        %1171 = vmatprep.subr.mxu0 0.0
        %1172 = vmatpush1.msra.mxu0 0.0
        %1173 = vmatprep.subr.mxu0 0.0
        %1174 = vmatpush1.msra.mxu0 0.0
        %1175 = vmatprep.subr.mxu0 0.0
        %1176 = vmatpush1.msra.mxu0 0.0
        %1177 = vmatprep.subr.mxu0 0.0
        %1178 = vmatpush1.msra.mxu0 0.0
        %1179 = vmatprep.subr.mxu0 0.0
        %1180 = vmatpush1.msra.mxu0 0.0
        %1181 = vmatprep.subr.mxu0 0.0
        %1182 = vmatpush1.msra.mxu0 0.0
        %1183 = vmatprep.subr.mxu0 0.0
        %1184 = vmatpush1.msra.mxu0 0.0
        %1185 = vmatprep.subr.mxu0 0.0
        %1186 = vmatpush1.msra.mxu0 0.0
        %1187 = vmatprep.subr.mxu0 0.0
        %1188 = vmatpush1.msra.mxu0 0.0
        %1189 = vmatprep.subr.mxu0 0.0
        %1190 = vmatpush1.msra.mxu0 0.0
        %1191 = vmatprep.subr.mxu0 0.0
        %1192 = vmatpush1.msra.mxu0 0.0
        %1193 = vmatprep.subr.mxu0 0.0
        %1194 = vmatpush1.msra.mxu0 0.0
        %1195 = vmatprep.subr.mxu0 0.0
        %1196 = vmatpush1.msra.mxu0 0.0
        %1197 = vmatprep.subr.mxu0 0.0
        %1198 = vmatpush1.msra.mxu0 0.0
        %1199 = vmatprep.subr.mxu0 0.0
        %1200 = vmatpush1.msra.mxu0 0.0
        %1201 = vmatprep.subr.mxu0 0.0
        %1202 = vmatpush1.msra.mxu0 0.0
        %1203 = vmatprep.subr.mxu0 0.0
        %1204 = vmatpush1.msra.mxu0 0.0
        %1205 = vmatprep.subr.mxu0 0.0
        %1206 = vmatpush1.msra.mxu0 0.0
        %1207 = vmatprep.subr.mxu0 0.0
        %1208 = vmatpush1.msra.mxu0 0.0
        %1209 = vmatprep.subr.mxu0 0.0
        %1210 = vmatpush1.msra.mxu0 0.0
        %1211 = vmatprep.subr.mxu0 0.0
        %1212 = vmatpush1.msra.mxu0 0.0
        %1213 = vmatprep.subr.mxu0 0.0
        %1214 = vmatpush1.msra.mxu0 0.0
        %1215 = vmatprep.subr.mxu0 0.0
        %1216 = vmatpush1.msra.mxu0 0.0
        %1217 = vmatprep.subr.mxu0 0.0
        %1218 = vmatpush1.msra.mxu0 0.0
        %1219 = vmatprep.subr.mxu0 0.0
        %1220 = vmatpush1.msra.mxu0 0.0
        %1221 = vmatprep.subr.mxu0 0.0
        %1222 = vmatpush1.msra.mxu0 0.0
        %1223 = vmatprep.subr.mxu0 0.0
        %1224 = vmatpush1.msra.mxu0 0.0
        %1225 = vmatprep.subr.mxu0 0.0
        %1226 = vmatpush1.msra.mxu0 0.0
        %1227 = vmatprep.subr.mxu0 0.0
        %1228 = vmatpush1.msra.mxu0 0.0
        %1229 = vmatprep.mubr.f32.mxu0 0.0
        %1230 = vmatmul.mubr.f32.gmra.mrb[0].mxu0 %v1163
        %v1231 = vpop.f32.mrb[0].mxu0
        %v1232 = vadd.f32 0.0, %v1231
        %v1233 = vpop.f32.mrb[0].mxu0
        %1234 = vdwg.mxu0
        %s1235 = scalar_lea.vmem %s449, 24 [#allocation10]
        %v1236 = vld [vmem:[%s1235] sm:$0xff]
        %1237 = vrot.lane.b32.xlu0 %v580, 104
        %v1238 = vpop.permute.xlu0 %1237
        %1239 = vrot.lane.b32.xlu0 %v654, 104
        %v1240 = vpop.permute.xlu0 %1239
        %v1241 = vsel %vm739, %v1238, 0
        %v1243 = vsel %vm739, %v1240, 0
        %1245 = vmatprep.subr.mxu0 0.0
        %1246 = vmatpush1.xpose.msra.mxu0 %v1243
        %1247 = vmatprep.subr.mxu0 0.0
        %1248 = vmatpush1.xpose.msra.mxu0 0.0
        %1249 = vmatprep.subr.mxu0 0.0
        %1250 = vmatpush1.xpose.msra.mxu0 0.0
        %1251 = vmatprep.subr.mxu0 0.0
        %1252 = vmatpush1.xpose.msra.mxu0 0.0
        %1253 = vmatprep.subr.mxu0 0.0
        %1254 = vmatpush1.xpose.msra.mxu0 0.0
        %1255 = vmatprep.subr.mxu0 0.0
        %1256 = vmatpush1.xpose.msra.mxu0 0.0
        %1257 = vmatprep.subr.mxu0 0.0
        %1258 = vmatpush1.xpose.msra.mxu0 0.0
        %1259 = vmatprep.subr.mxu0 0.0
        %1260 = vmatpush1.xpose.msra.mxu0 0.0
        %1261 = vmatprep.subr.mxu0 0.0
        %1262 = vmatpush1.xpose.msra.mxu0 0.0
        %1263 = vmatprep.subr.mxu0 0.0
        %1264 = vmatpush1.xpose.msra.mxu0 0.0
        %1265 = vmatprep.subr.mxu0 0.0
        %1266 = vmatpush1.xpose.msra.mxu0 0.0
        %1267 = vmatprep.subr.mxu0 0.0
        %1268 = vmatpush1.xpose.msra.mxu0 0.0
        %1269 = vmatprep.subr.mxu0 0.0
        %1270 = vmatpush1.xpose.msra.mxu0 0.0
        %1271 = vmatprep.subr.mxu0 0.0
        %1272 = vmatpush1.xpose.msra.mxu0 0.0
        %1273 = vmatprep.subr.mxu0 0.0
        %1274 = vmatpush1.xpose.msra.mxu0 0.0
        %1275 = vmatprep.subr.mxu0 0.0
        %1276 = vmatpush1.xpose.msra.mxu0 0.0
        %1277 = vmatprep.subr.mxu0 0.0
        %1278 = vmatpush1.xpose.msra.mxu0 0.0
        %1279 = vmatprep.subr.mxu0 0.0
        %1280 = vmatpush1.xpose.msra.mxu0 0.0
        %1281 = vmatprep.subr.mxu0 0.0
        %1282 = vmatpush1.xpose.msra.mxu0 0.0
        %1283 = vmatprep.subr.mxu0 0.0
        %1284 = vmatpush1.xpose.msra.mxu0 0.0
        %1285 = vmatprep.subr.mxu0 0.0
        %1286 = vmatpush1.xpose.msra.mxu0 0.0
        %1287 = vmatprep.subr.mxu0 0.0
        %1288 = vmatpush1.xpose.msra.mxu0 0.0
        %1289 = vmatprep.subr.mxu0 0.0
        %1290 = vmatpush1.xpose.msra.mxu0 0.0
        %1291 = vmatprep.subr.mxu0 0.0
        %1292 = vmatpush1.xpose.msra.mxu0 0.0
        %1293 = vmatprep.subr.mxu0 0.0
        %1294 = vmatpush1.xpose.msra.mxu0 0.0
        %1295 = vmatprep.subr.mxu0 0.0
        %1296 = vmatpush1.xpose.msra.mxu0 0.0
        %1297 = vmatprep.subr.mxu0 0.0
        %1298 = vmatpush1.xpose.msra.mxu0 0.0
        %1299 = vmatprep.subr.mxu0 0.0
        %1300 = vmatpush1.xpose.msra.mxu0 0.0
        %1301 = vmatprep.subr.mxu0 0.0
        %1302 = vmatpush1.xpose.msra.mxu0 0.0
        %1303 = vmatprep.subr.mxu0 0.0
        %1304 = vmatpush1.xpose.msra.mxu0 0.0
        %1305 = vmatprep.subr.mxu0 0.0
        %1306 = vmatpush1.xpose.msra.mxu0 0.0
        %1307 = vmatprep.subr.mxu0 0.0
        %1308 = vmatpush1.xpose.msra.mxu0 0.0
        %1309 = vmatprep.mubr.f32.mxu0 0.0
        %1310 = vmatmul.mubr.f32.gmra.mrb[0].mxu0 %v1241
        %v1311 = vpop.f32.mrb[0].mxu0
        %v1312 = vadd.f32 %v1236, %v1311
        %v1313 = vpop.f32.mrb[0].mxu0
        %1314 = vdwg.mxu0
        %v1315 = vsel %vm739, %v1312, -inf
        %1316 = vmax.xlane.f32.xlu0 %v1315
        %v1317 = vpop.xlane.xlu0 %1316
        %v1318 = vsub.f32 %v1312, %v1317
        %v1319 = vmul.f32 %v1318, 1.442695
        %v1320 = vpow.pop %v1319
        %v1321 = vsel %vm739, %v1320, 0.0
        %1322 = vadd.xlane.f32.xlu0 %v1321
        %v1323 = vpop.xlane.xlu0 %1322
        %v1324 = vrcp.pop %v1323
        %v1325 = vmul.f32 %v1320, %v1324
        %1326 = vrot.lane.b32.xlu0 %v735, 104
        %v1327 = vpop.permute.xlu0 %1326
        %v1330 = vsel %vm739, %v1325, 0
        %1332 = vmatprep.subr.mxu0 0.0
        %1333 = vmatpush1.msra.mxu0 %v1327
        %1334 = vmatprep.subr.mxu0 0.0
        %1335 = vmatpush1.msra.mxu0 0.0
        %1336 = vmatprep.subr.mxu0 0.0
        %1337 = vmatpush1.msra.mxu0 0.0
        %1338 = vmatprep.subr.mxu0 0.0
        %1339 = vmatpush1.msra.mxu0 0.0
        %1340 = vmatprep.subr.mxu0 0.0
        %1341 = vmatpush1.msra.mxu0 0.0
        %1342 = vmatprep.subr.mxu0 0.0
        %1343 = vmatpush1.msra.mxu0 0.0
        %1344 = vmatprep.subr.mxu0 0.0
        %1345 = vmatpush1.msra.mxu0 0.0
        %1346 = vmatprep.subr.mxu0 0.0
        %1347 = vmatpush1.msra.mxu0 0.0
        %1348 = vmatprep.subr.mxu0 0.0
        %1349 = vmatpush1.msra.mxu0 0.0
        %1350 = vmatprep.subr.mxu0 0.0
        %1351 = vmatpush1.msra.mxu0 0.0
        %1352 = vmatprep.subr.mxu0 0.0
        %1353 = vmatpush1.msra.mxu0 0.0
        %1354 = vmatprep.subr.mxu0 0.0
        %1355 = vmatpush1.msra.mxu0 0.0
        %1356 = vmatprep.subr.mxu0 0.0
        %1357 = vmatpush1.msra.mxu0 0.0
        %1358 = vmatprep.subr.mxu0 0.0
        %1359 = vmatpush1.msra.mxu0 0.0
        %1360 = vmatprep.subr.mxu0 0.0
        %1361 = vmatpush1.msra.mxu0 0.0
        %1362 = vmatprep.subr.mxu0 0.0
        %1363 = vmatpush1.msra.mxu0 0.0
        %1364 = vmatprep.subr.mxu0 0.0
        %1365 = vmatpush1.msra.mxu0 0.0
        %1366 = vmatprep.subr.mxu0 0.0
        %1367 = vmatpush1.msra.mxu0 0.0
        %1368 = vmatprep.subr.mxu0 0.0
        %1369 = vmatpush1.msra.mxu0 0.0
        %1370 = vmatprep.subr.mxu0 0.0
        %1371 = vmatpush1.msra.mxu0 0.0
        %1372 = vmatprep.subr.mxu0 0.0
        %1373 = vmatpush1.msra.mxu0 0.0
        %1374 = vmatprep.subr.mxu0 0.0
        %1375 = vmatpush1.msra.mxu0 0.0
        %1376 = vmatprep.subr.mxu0 0.0
        %1377 = vmatpush1.msra.mxu0 0.0
        %1378 = vmatprep.subr.mxu0 0.0
        %1379 = vmatpush1.msra.mxu0 0.0
        %1380 = vmatprep.subr.mxu0 0.0
        %1381 = vmatpush1.msra.mxu0 0.0
        %1382 = vmatprep.subr.mxu0 0.0
        %1383 = vmatpush1.msra.mxu0 0.0
        %1384 = vmatprep.subr.mxu0 0.0
        %1385 = vmatpush1.msra.mxu0 0.0
        %1386 = vmatprep.subr.mxu0 0.0
        %1387 = vmatpush1.msra.mxu0 0.0
        %1388 = vmatprep.subr.mxu0 0.0
        %1389 = vmatpush1.msra.mxu0 0.0
        %1390 = vmatprep.subr.mxu0 0.0
        %1391 = vmatpush1.msra.mxu0 0.0
        %1392 = vmatprep.subr.mxu0 0.0
        %1393 = vmatpush1.msra.mxu0 0.0
        %1394 = vmatprep.subr.mxu0 0.0
        %1395 = vmatpush1.msra.mxu0 0.0
        %1396 = vmatprep.mubr.f32.mxu0 0.0
        %1397 = vmatmul.mubr.f32.gmra.mrb[0].mxu0 %v1330
        %v1398 = vpop.f32.mrb[0].mxu0
        %v1399 = vadd.f32 0.0, %v1398
        %v1400 = vpop.f32.mrb[0].mxu0
        %1401 = vdwg.mxu0
        %1403 = vrot.lane.b32.xlu0 %v1065, 8
        %v1404 = vpop.permute.xlu0 %1403
        %1407 = vrot.lane.b32.xlu0 %v1232, 16
        %v1408 = vpop.permute.xlu0 %1407
        %1411 = vrot.lane.b32.xlu0 %v1399, 24
        %v1412 = vpop.permute.xlu0 %1411
        %v1414 = vsel %vm739, %v897, %v1404
        %vm1415 = vcmask 130048
        %v1416 = vsel %vm1415, %v1414, %v1408
        %vm1417 = vcmask 195584
        %v1418 = vsel %vm1417, %v1416, %v1412
        %v1419 = vld [vmem:[#allocation11] sm:$0xff]
        %v1420 = vld [vmem:[#allocation11 + $0x8] sm:$0xff]
        %v1421 = vld [vmem:[#allocation11 + $0x10] sm:$0xff]
        %v1422 = vld [vmem:[#allocation11 + $0x18] sm:$0xff]
        %v1423 = vld [vmem:[%s8] sm:$0x1]
        %v1425 = vlaneseq
        %v1426 = vshrl.u32 %v1425, 7
        %v1427 = vsub.s32 0, %v1426
        %v1428 = vrot.slane %v1423, %v1427
        %v1431 = vsel %vm509, %v1418, 0
        %1433 = vmatprep.subr.mxu0 0.0
        %1434 = vmatpush1.msra.mxu0 %v1419
        %1435 = vmatprep.subr.mxu0 0.0
        %1436 = vmatpush1.msra.mxu0 %v1420
        %1437 = vmatprep.subr.mxu0 0.0
        %1438 = vmatpush1.msra.mxu0 %v1421
        %1439 = vmatprep.subr.mxu0 0.0
        %1440 = vmatpush1.msra.mxu0 %v1422
        %1441 = vmatprep.subr.mxu0 0.0
        %1442 = vmatpush1.msra.mxu0 0.0
        %1443 = vmatprep.subr.mxu0 0.0
        %1444 = vmatpush1.msra.mxu0 0.0
        %1445 = vmatprep.subr.mxu0 0.0
        %1446 = vmatpush1.msra.mxu0 0.0
        %1447 = vmatprep.subr.mxu0 0.0
        %1448 = vmatpush1.msra.mxu0 0.0
        %1449 = vmatprep.subr.mxu0 0.0
        %1450 = vmatpush1.msra.mxu0 0.0
        %1451 = vmatprep.subr.mxu0 0.0
        %1452 = vmatpush1.msra.mxu0 0.0
        %1453 = vmatprep.subr.mxu0 0.0
        %1454 = vmatpush1.msra.mxu0 0.0
        %1455 = vmatprep.subr.mxu0 0.0
        %1456 = vmatpush1.msra.mxu0 0.0
        %1457 = vmatprep.subr.mxu0 0.0
        %1458 = vmatpush1.msra.mxu0 0.0
        %1459 = vmatprep.subr.mxu0 0.0
        %1460 = vmatpush1.msra.mxu0 0.0
        %1461 = vmatprep.subr.mxu0 0.0
        %1462 = vmatpush1.msra.mxu0 0.0
        %1463 = vmatprep.subr.mxu0 0.0
        %1464 = vmatpush1.msra.mxu0 0.0
        %1465 = vmatprep.subr.mxu0 0.0
        %1466 = vmatpush1.msra.mxu0 0.0
        %1467 = vmatprep.subr.mxu0 0.0
        %1468 = vmatpush1.msra.mxu0 0.0
        %1469 = vmatprep.subr.mxu0 0.0
        %1470 = vmatpush1.msra.mxu0 0.0
        %1471 = vmatprep.subr.mxu0 0.0
        %1472 = vmatpush1.msra.mxu0 0.0
        %1473 = vmatprep.subr.mxu0 0.0
        %1474 = vmatpush1.msra.mxu0 0.0
        %1475 = vmatprep.subr.mxu0 0.0
        %1476 = vmatpush1.msra.mxu0 0.0
        %1477 = vmatprep.subr.mxu0 0.0
        %1478 = vmatpush1.msra.mxu0 0.0
        %1479 = vmatprep.subr.mxu0 0.0
        %1480 = vmatpush1.msra.mxu0 0.0
        %1481 = vmatprep.subr.mxu0 0.0
        %1482 = vmatpush1.msra.mxu0 0.0
        %1483 = vmatprep.subr.mxu0 0.0
        %1484 = vmatpush1.msra.mxu0 0.0
        %1485 = vmatprep.subr.mxu0 0.0
        %1486 = vmatpush1.msra.mxu0 0.0
        %1487 = vmatprep.subr.mxu0 0.0
        %1488 = vmatpush1.msra.mxu0 0.0
        %1489 = vmatprep.subr.mxu0 0.0
        %1490 = vmatpush1.msra.mxu0 0.0
        %1491 = vmatprep.subr.mxu0 0.0
        %1492 = vmatpush1.msra.mxu0 0.0
        %1493 = vmatprep.subr.mxu0 0.0
        %1494 = vmatpush1.msra.mxu0 0.0
        %1495 = vmatprep.subr.mxu0 0.0
        %1496 = vmatpush1.msra.mxu0 0.0
        %1497 = vmatprep.mubr.f32.mxu0 0.0
        %1498 = vmatmul.mubr.f32.gmra.mrb[0].mxu0 %v1431
        %v1499 = vpop.f32.mrb[0].mxu0
        %v1500 = vadd.f32 %v1428, %v1499
        %v1501 = vpop.f32.mrb[0].mxu0
        %1502 = vdwg.mxu0
        %v1503 = vadd.f32 %v1500, %v497
        %v1504 = vsel %vm509, %v1503, 0.0
        %1505 = vadd.xlane.f32.xlu0 %v1504
        %v1506 = vpop.xlane.xlu0 %1505
        %v1507 = vrcp.pop 32.0
        %v1508 = vmul.f32 %v1506, %v1507
        %v1509 = vsub.f32 %v1503, %v1508
        %v1510 = vmul.f32 %v1509, %v1509
        %v1511 = vsel %vm509, %v1510, 0.0
        %1512 = vadd.xlane.f32.xlu0 %v1511
        %v1513 = vpop.xlane.xlu0 %1512
        %v1514 = vmul.f32 %v1513, %v1507
        %v1515 = vadd.f32 %v1514, 1e-12
        %v1516 = vrsqrt.pop %v1515
        %v1517 = vmul.f32 %v1509, %v1516
        %v1518 = vld [vmem:[%s9] sm:$0x1]
        %v1520 = vlaneseq
        %v1521 = vshrl.u32 %v1520, 7
        %v1522 = vsub.s32 0, %v1521
        %v1523 = vrot.slane %v1518, %v1522
        %v1525 = vmul.f32 %v1517, %v1523
        %v1526 = vld [vmem:[%s10] sm:$0x1]
        %v1528 = vlaneseq
        %v1529 = vshrl.u32 %v1528, 7
        %v1530 = vsub.s32 0, %v1529
        %v1531 = vrot.slane %v1526, %v1530
        %v1533 = vadd.f32 %v1525, %v1531
        %1534 = vst.msk [vmem:[%s496] sm:$0xff] %vm509, %v1533
        %s1535 = sand.u32 %s279, 1
        %s1536 = scalar_lea.sflag [#allocation4], %s1535
        %s1537 = sand.u32 %s279, 1
        %s1538 = smul.addr %s1537, 8
        %s1539 = scalar_lea.vmem [#allocation12], %s1538
        // Predicated region
        $region89: #{tpu_custom_call.1} parent=63 // pred_check
          %p1540 = pneg %p289
        $region90: #{tpu_custom_call.1} parent=63 // pred_check_branch
          %1542 = sbr.rel (%p1540) target = $region92
        $region91: #{tpu_custom_call.1} parent=63 // pred_region
          %s1544 = ssub.s32 128, 128
          %1545 = vsyncadd %s1536, %s1544
          %s1546 = smul.addr %s30, 128
          %s1547 = scalar_lea.hbm %s11, %s1546
          %s1549 = sshll.u32 %s1539, 4
          %s1550 = int_to_ptr.vmem [resolvable:$true] %s1549
          %1552 = dma.vmem_to_hbm [thread:$0]  %s1550, 128, %s1547, %s1536
        $region92: #{tpu_custom_call.1} parent=63 // pred_fallthru
          _
      $region64: #{tpu_custom_call.1} parent=5 // pred_fallthru
        _
      %p1553 = scmp.le.s32.totalorder 2, %s25
      // Predicated region
      $region93: #{tpu_custom_call.1} parent=5 // pred_check
        %p1554 = pneg %p1553
      $region94: #{tpu_custom_call.1} parent=5 // pred_check_branch
        %1556 = sbr.rel (%p1554) target = $region96
      $region95: #{tpu_custom_call.1} parent=5 // pred_region
        %s1557 = ssub.s32 %s25, 2
        // Predicated region
        $region97: #{tpu_custom_call.1} parent=95 // pred_check
          %p1558 = pneg %p295
        $region98: #{tpu_custom_call.1} parent=95 // pred_check_branch
          %1560 = sbr.rel (%p1558) target = $region100
        $region99: #{tpu_custom_call.1} parent=95 // pred_region
          %s1561 = sand.u32 %s280, 1
          %s1562 = scalar_lea.sflag [#allocation4], %s1561
          %s1563 = sand.u32 %s280, 1
          %s1564 = smul.addr %s1563, 8
          %s1565 = scalar_lea.vmem [#allocation12], %s1564
          %1566 = dma.done %s1562, 128
        $region100: #{tpu_custom_call.1} parent=95 // pred_fallthru
          _
      $region96: #{tpu_custom_call.1} parent=5 // pred_fallthru
        _
    $region6: #{tpu_custom_call.1} parent=1 // loop_footer
      %s29 = sadd.s32 1, %s25
    $region7: #{tpu_custom_call.1} parent=1 // loop_footer_branch
      %24 = sbr.rel target = $region3
    $region8: #{tpu_custom_call.1} parent=1 // loop_exit
      _
    %1567 = vsyncpa [#allocation3], 1
    %s1568 = scalar_lea.sflag [#allocation3], 1
    %1569 = vsyncpa %s1568, 1
    %1570 = vsyncpa [#allocation6], 1
    %1571 = vsyncpa [#allocation9], 1
    %1572 = vsyncpa [#allocation4], 1
    %s1573 = scalar_lea.sflag [#allocation4], 1
    %1574 = vsyncpa %s1573, 1

</llo_original>
